<compile_context>
chip_gen: v7x
topology: tpu7x:2x2x1
jax: 0.10.0
libtpu: 0.0.40
codegen_flags: <defaults>
</compile_context>

<pallas_src>
import jax
import jax.numpy as jnp
from jax import lax
from jax.experimental import pallas as pl
from jax.experimental.pallas import tpu as pltpu


# --------------------------------------------------------------------------
# Weight preparation (plain JAX; layout/algebra only, no data-sized compute)
# --------------------------------------------------------------------------
def _fold1d(A, phase):
    """Fold the x2 FIR upsample (k=[1,3,3,1]) into 3 conv taps along one axis.

    A: (3, ...) conv taps at offsets (-1, 0, +1).  Returns the 3 effective
    taps on the input-resolution grid for output sub-pixel `phase`
    (1-D FIR phases: even = 0.25*x[i-1]+0.75*x[i], odd = 0.75*x[i]+0.25*x[i+1]).
    """
    if phase == 0:
        return jnp.stack([0.75 * A[0] + 0.25 * A[1],
                          0.25 * A[0] + 0.75 * A[1] + 0.75 * A[2],
                          0.25 * A[2]])
    return jnp.stack([0.25 * A[0],
                      0.75 * A[0] + 0.75 * A[1] + 0.25 * A[2],
                      0.25 * A[1] + 0.75 * A[2]])


def _prepare_weights(w_hwio, bias):
    """Build folded weights.  Output-lane layout: lane = (2*p + q)*Co + co."""
    C, Co = w_hwio.shape[2], w_hwio.shape[3]
    L = 4 * Co
    wmain = jnp.zeros((9 * C, L), jnp.float32)      # (tap k = kh*3+kw, ci) x lanes
    wedge = jnp.zeros((4, 3, C, L), jnp.float32)    # 0=top 1=bottom 2=left 3=right
    wcorn = jnp.zeros((4, C, L), jnp.float32)       # 0=TL 1=TR 2=BL 3=BR

    for q in (0, 1):
        # fold the FIR along the kw axis for output column phase q
        wcq = jnp.swapaxes(_fold1d(jnp.swapaxes(w_hwio, 0, 1), q), 0, 1)  # (kh, v, C, Co)
        for p in (0, 1):
            weff = _fold1d(wcq, p)                  # (u, v, C, Co): per-phase 3x3
            col = (2 * p + q) * Co
            wmain = wmain.at[:, col:col + Co].set(weff.reshape(9 * C, Co))
        # Edge corrections: the conv's zero padding of y truncates the FIR
        # tail (coefficient 0.25) on the outermost output ring.
        wedge = wedge.at[0, :, :, q * Co:(q + 1) * Co].set(0.25 * wcq[0])        # top (p=0)
        wedge = wedge.at[1, :, :, (2 + q) * Co:(3 + q) * Co].set(0.25 * wcq[2])  # bottom (p=1)
    for p in (0, 1):
        wrp = _fold1d(w_hwio, p)                    # (u, kw, C, Co)
        wedge = wedge.at[2, :, :, 2 * p * Co:(2 * p + 1) * Co].set(0.25 * wrp[:, 0])        # left (q=0)
        wedge = wedge.at[3, :, :, (2 * p + 1) * Co:(2 * p + 2) * Co].set(0.25 * wrp[:, 2])  # right (q=1)

    # Corners are subtracted by both the row and the column corrections;
    # add the doubly-counted term (0.25*0.25 FIR tail) back once.
    wcorn = wcorn.at[0, :, 0 * Co:1 * Co].set(0.0625 * w_hwio[0, 0])
    wcorn = wcorn.at[1, :, 1 * Co:2 * Co].set(0.0625 * w_hwio[0, 2])
    wcorn = wcorn.at[2, :, 2 * Co:3 * Co].set(0.0625 * w_hwio[2, 0])
    wcorn = wcorn.at[3, :, 3 * Co:4 * Co].set(0.0625 * w_hwio[2, 2])

    bias4 = jnp.tile(bias, 4).reshape(1, L).astype(jnp.float32)
    return (wmain.astype(jnp.bfloat16),
            wedge.reshape(4, 3 * C, L).astype(jnp.bfloat16),   # fused per-edge weights
            wcorn.reshape(4 * C, L).astype(jnp.bfloat16),      # fused corner weights
            bias4)


# --------------------------------------------------------------------------
# Pallas kernel
# --------------------------------------------------------------------------
def _ray_upsampler_kernel(col_ref, top_ref, bot_ref, lft_ref, rgt_ref, cor_ref,
                          wm_ref, we_ref, wc_ref, b_ref, o_ref):
    # col_ref: (Nb, H*W, 9C) bf16  im2col of the zero-padded input
    # top/bot: (Nb, W, 3C)   bf16  boundary row strips (padded rows 1 / H)
    # lft/rgt: (Nb, H, 3C)   bf16  boundary col strips (padded cols 1 / W)
    # cor_ref: (Nb, 1, 4C)   bf16  the 4 corner pixels (TL,TR,BL,BR), corner-major
    # wm_ref : (9C, L)       bf16  FIR-folded conv weights; lane = (2p+q)*Co+co
    # we_ref : (4, 3C, L)    bf16  edge-correction weights (0=t 1=b 2=l 3=r)
    # wc_ref : (4C, L)       bf16  corner add-back weights (stripe-block-diagonal)
    # b_ref  : (1, L)        f32   bias replicated per phase
    # o_ref  : (Nb, H, W, L) f32   lane-dense output
    Nb, H, W, L = o_ref.shape
    Co = L // 4
    K9 = col_ref.shape[2]
    K3 = we_ref.shape[1]
    K4 = wc_ref.shape[0]
    f32 = jnp.float32

    # ---- one MXU matmul for all 4 output phases; bias folded into the result
    acc = jnp.dot(col_ref[...].reshape(Nb * H * W, K9), wm_ref[...],
                  preferred_element_type=f32) + b_ref[...]
    o_ref[...] = acc.reshape(Nb, H, W, L).astype(o_ref.dtype)

    # ---- edge corrections: one fused (Nb*S, 3C)@(3C, L) matmul per edge
    def edge(strip_ref, e):
        s = strip_ref.shape[1]
        return jnp.dot(strip_ref[...].reshape(Nb * s, K3), we_ref[e],
                       preferred_element_type=f32).reshape(Nb, s, L)

    corr_t = edge(top_ref, 0)     # (Nb, W, L)  nonzero in p=0 lane stripes
    corr_b = edge(bot_ref, 1)     # (Nb, W, L)  nonzero in p=1 lane stripes
    corr_l = edge(lft_ref, 2)     # (Nb, H, L)  nonzero in q=0 lane stripes
    corr_r = edge(rgt_ref, 3)     # (Nb, H, L)  nonzero in q=1 lane stripes

    # ---- corner add-back (row+column corrections double-count the FIR tail).
    #      Single fused matmul; corner c lands only in lane stripe [c*Co,(c+1)*Co),
    #      so it can be folded into the top/bottom row corrections via tiny masks.
    cres = jnp.dot(cor_ref[...].reshape(Nb, K4), wc_ref[...],
                   preferred_element_type=f32)                      # (Nb, L)
    iw = lax.broadcasted_iota(jnp.int32, (1, W, L), 1)
    il = lax.broadcasted_iota(jnp.int32, (1, W, L), 2)
    first_col, last_col = iw == 0, iw == W - 1
    m_t = (first_col & (il < Co)) | (last_col & (il >= Co) & (il < 2 * Co))
    m_b = (first_col & (il >= 2 * Co) & (il < 3 * Co)) | (last_col & (il >= 3 * Co))
    corr_t = corr_t - jnp.where(m_t, cres[:, None, :], 0.0)
    corr_b = corr_b - jnp.where(m_b, cres[:, None, :], 0.0)

    # ---- boundary slice read-modify-write: touches only the output ring
    o_ref[:, 0:1, :, :] = o_ref[:, 0:1, :, :] - corr_t[:, None, :, :]
    o_ref[:, H - 1:H, :, :] = o_ref[:, H - 1:H, :, :] - corr_b[:, None, :, :]
    o_ref[:, :, 0:1, :] = o_ref[:, :, 0:1, :] - corr_l[:, :, None, :]
    o_ref[:, :, W - 1:W, :] = o_ref[:, :, W - 1:W, :] - corr_r[:, :, None, :]


def ray_upsampler_forward(x_nchw, w_hwio, bias, *, batch_block=None):
    """RayUpsampler.forward.  x_nchw: (N, C, H, W) -> (N, Co, 2H, 2W)."""
    N, C, H, W = x_nchw.shape
    assert H >= 2 and W >= 2, "boundary-correction fold assumes H, W >= 2"
    Co = w_hwio.shape[-1]
    L = 4 * Co

    # Batch blocking: amortize the ~0.35us/step pipeline overhead.  Keep the
    # grid >= 2 steps when N >= 2 so ("parallel",) can split across v7x's two
    # TensorCores.
    if batch_block is None:
        batch_block = max(1, min(8, N // 2)) if N >= 2 else 1
    nb = batch_block
    G = pl.cdiv(N, nb)
    Np = G * nb

    # bf16 input, NHWC, zero halo of 1 (halves DMA and relayout traffic).
    x_nhwc = jnp.transpose(x_nchw, (0, 2, 3, 1)).astype(jnp.bfloat16)
    if Np != N:
        x_nhwc = jnp.pad(x_nhwc, ((0, Np - N), (0, 0), (0, 0), (0, 0)))
    xp = jnp.pad(x_nhwc, ((0, 0), (1, 1), (1, 1), (0, 0)))

    # Layout plumbing in the wrapper (XLA): im2col + tiny boundary strips.
    # The kernel is then pure lane-dense MXU matmuls + ring fixups.
    col = jnp.concatenate(
        [xp[:, kh:kh + H, kw:kw + W, :] for kh in range(3) for kw in range(3)],
        axis=-1).reshape(Np, H * W, 9 * C)
    top = jnp.concatenate([xp[:, 1, v:v + W, :] for v in range(3)], axis=-1)
    bot = jnp.concatenate([xp[:, H, v:v + W, :] for v in range(3)], axis=-1)
    lft = jnp.concatenate([xp[:, u:u + H, 1, :] for u in range(3)], axis=-1)
    rgt = jnp.concatenate([xp[:, u:u + H, W, :] for u in range(3)], axis=-1)
    cor = jnp.concatenate([xp[:, 1, 1, :], xp[:, 1, W, :],
                           xp[:, H, 1, :], xp[:, H, W, :]],
                          axis=-1).reshape(Np, 1, 4 * C)

    wmain, wedge, wcorn, bias4 = _prepare_weights(
        w_hwio.astype(jnp.float32), bias.astype(jnp.float32))

    flops = 2 * Np * (H * W * 9 * C + 2 * (H + W) * 3 * C + 4 * C) * L
    bytes_accessed = (2 * (col.size + top.size + bot.size + lft.size + rgt.size
                           + cor.size + wmain.size + wedge.size + wcorn.size)
                      + 4 * (bias4.size + Np * H * W * L))

    out_phases = pl.pallas_call(
        _ray_upsampler_kernel,
        out_shape=jax.ShapeDtypeStruct((Np, H, W, L), jnp.float32),
        grid_spec=pltpu.PrefetchScalarGridSpec(
            num_scalar_prefetch=0,
            grid=(G,),
            in_specs=[
                pl.BlockSpec((nb, H * W, 9 * C), lambda g: (g, 0, 0)),
                pl.BlockSpec((nb, W, 3 * C), lambda g: (g, 0, 0)),
                pl.BlockSpec((nb, W, 3 * C), lambda g: (g, 0, 0)),
                pl.BlockSpec((nb, H, 3 * C), lambda g: (g, 0, 0)),
                pl.BlockSpec((nb, H, 3 * C), lambda g: (g, 0, 0)),
                pl.BlockSpec((nb, 1, 4 * C), lambda g: (g, 0, 0)),
                pl.BlockSpec((9 * C, L), lambda g: (0, 0)),
                pl.BlockSpec((4, 3 * C, L), lambda g: (0, 0, 0)),
                pl.BlockSpec((4 * C, L), lambda g: (0, 0)),
                pl.BlockSpec((1, L), lambda g: (0, 0)),
            ],
            out_specs=pl.BlockSpec((nb, H, W, L), lambda g: (g, 0, 0, 0)),
        ),
        compiler_params=pltpu.CompilerParams(
            dimension_semantics=("parallel",)),
        cost_estimate=pl.CostEstimate(flops=int(flops), transcendentals=0,
                                      bytes_accessed=int(bytes_accessed)),
    )(col, top, bot, lft, rgt, cor, wmain, wedge, wcorn, bias4)

    # De-interleave the 2x2 sub-pixel phases (layout plumbing only):
    # lane = (2*p + q)*Co + co  ->  (N, Co, 2H, 2W).
    y = out_phases[:N].reshape(N, H, W, 2, 2, Co)
    y = jnp.transpose(y, (0, 5, 1, 3, 2, 4)).reshape(N, Co, 2 * H, 2 * W)
    return y


# ------------------------- pure-JAX reference ------------------------------
def _fir_upsample_ref(x_nhwc, fir2d):
    # exact upfirdn2d(x, k=fir2d, up=2, pad=(2,1)) (k is symmetric, so no flip)
    N, H, W, C = x_nhwc.shape
    xr = jnp.transpose(x_nhwc, (0, 3, 1, 2)).reshape(N * C, H, W, 1)
    k = fir2d[:, :, None, None]                             # (4,4,1,1) HWIO
    y = jax.lax.conv_general_dilated(
        xr, k, window_strides=(1, 1), padding=((2, 2), (2, 2)),
        lhs_dilation=(2, 2), rhs_dilation=(1, 1),
        dimension_numbers=('NHWC', 'HWIO', 'NHWC'),
        precision=jax.lax.Precision.HIGHEST)
    return y.reshape(N, C, 2 * H, 2 * W).transpose(0, 2, 3, 1)


def _conv3x3_ref(y_nhwc, w_hwio, bias):
    out = jax.lax.conv_general_dilated(
        y_nhwc, w_hwio, window_strides=(1, 1), padding=((1, 1), (1, 1)),
        dimension_numbers=('NHWC', 'HWIO', 'NHWC'),
        precision=jax.lax.Precision.HIGHEST)
    return out + bias[None, None, None, :]


if __name__ == "__main__":
    key = jax.random.PRNGKey(0)
    nf = 8
    C = nf * 4                     # conv is (nf*4 -> nf*4)
    N, H, W = 2, 16, 16

    k1, k2, k3 = jax.random.split(key, 3)
    x = jax.random.normal(k1, (N, C, H, W), jnp.float32)
    # deterministic synthetic parameters (conv3x3 weight in HWIO, plus bias)
    w = jax.random.normal(k2, (3, 3, C, C), jnp.float32) * 0.05
    bias = jax.random.normal(k3, (C,), jnp.float32) * 0.1

    out = jax.jit(ray_upsampler_forward)(x, w, bias)
    out = jax.block_until_ready(out)
    assert out.shape == (N, C, 2 * H, 2 * W)

    # reference: upsample_2d(k=[1,3,3,1], factor=2) followed by conv3x3(pad=1)
    fir1d = jnp.array([1., 3., 3., 1.], jnp.float32)
    fir2d = jnp.outer(fir1d, fir1d)
    fir2d = fir2d / jnp.sum(fir2d) * 4.0      # * gain * factor**2
    x_nhwc = jnp.transpose(x, (0, 2, 3, 1))
    ref = _conv3x3_ref(_fir_upsample_ref(x_nhwc, fir2d), w, bias)
    ref = jnp.transpose(ref, (0, 3, 1, 2))

    max_err = float(jnp.max(jnp.abs(out - ref)))
    if not jnp.allclose(out, ref, atol=2e-2, rtol=2e-2):
        raise AssertionError(f"kernel/reference mismatch, max abs err={max_err}")
    print("KERNEL_OK")
</pallas_src>

<mosaic_0001>
module attributes {stable_mosaic.version = 11 : i64} {
  func.func @_ray_upsampler_kernel(%arg0: i32, %arg1: memref<1x256x288xbf16, #tpu.memory_space<vmem>>, %arg2: memref<1x16x96xbf16, #tpu.memory_space<vmem>>, %arg3: memref<1x16x96xbf16, #tpu.memory_space<vmem>>, %arg4: memref<1x16x96xbf16, #tpu.memory_space<vmem>>, %arg5: memref<1x16x96xbf16, #tpu.memory_space<vmem>>, %arg6: memref<1x1x128xbf16, #tpu.memory_space<vmem>>, %arg7: memref<288x128xbf16, #tpu.memory_space<vmem>>, %arg8: memref<4x96x128xbf16, #tpu.memory_space<vmem>>, %arg9: memref<128x128xbf16, #tpu.memory_space<vmem>>, %arg10: memref<1x128xf32, #tpu.memory_space<vmem>>, %arg11: memref<1x16x16x128xf32, #tpu.memory_space<vmem>>) attributes {dimension_semantics = [#tpu.dimension_semantics<parallel>], iteration_bounds = array<i64: 2>, scalar_prefetch = 0 : i64, scratch_operands = 0 : i64, tpu.core_type = #tpu.core_type<tc>, window_params = [{transform_indices = @transform_0, window_bounds = array<i64: 1, 256, 288>}, {transform_indices = @transform_1, window_bounds = array<i64: 1, 16, 96>}, {transform_indices = @transform_2, window_bounds = array<i64: 1, 16, 96>}, {transform_indices = @transform_3, window_bounds = array<i64: 1, 16, 96>}, {transform_indices = @transform_4, window_bounds = array<i64: 1, 16, 96>}, {transform_indices = @transform_5, window_bounds = array<i64: 1, 1, 128>}, {pipeline_mode = #tpu.pipeline_mode<synchronous>, transform_indices = @transform_6, window_bounds = array<i64: 288, 128>}, {pipeline_mode = #tpu.pipeline_mode<synchronous>, transform_indices = @transform_7, window_bounds = array<i64: 4, 96, 128>}, {pipeline_mode = #tpu.pipeline_mode<synchronous>, transform_indices = @transform_8, window_bounds = array<i64: 128, 128>}, {pipeline_mode = #tpu.pipeline_mode<synchronous>, transform_indices = @transform_9, window_bounds = array<i64: 1, 128>}, {transform_indices = @transform_10, window_bounds = array<i64: 1, 16, 16, 128>}]} {
    %c0 = arith.constant 0 : index
    %c0_0 = arith.constant 0 : index
    %c0_1 = arith.constant 0 : index
    %0 = vector.load %arg1[%c0, %c0_0, %c0_1] : memref<1x256x288xbf16, #tpu.memory_space<vmem>>, vector<1x256x288xbf16>
    %1 = vector.shape_cast %0 : vector<1x256x288xbf16> to vector<256x288xbf16>
    %c0_2 = arith.constant 0 : index
    %c0_3 = arith.constant 0 : index
    %2 = vector.load %arg7[%c0_2, %c0_3] : memref<288x128xbf16, #tpu.memory_space<vmem>>, vector<288x128xbf16>
    %cst = arith.constant dense<0.000000e+00> : vector<256x128xf32>
    %3 = tpu.matmul %1, %2, %cst {dimension_numbers = #tpu.dot_dimension_numbers<[1], [0], [0], [1], [0, 0, 1, 1], [], []>} : vector<256x288xbf16>, vector<288x128xbf16>, vector<256x128xf32> -> vector<256x128xf32>
    %c0_4 = arith.constant 0 : index
    %c0_5 = arith.constant 0 : index
    %4 = vector.load %arg10[%c0_4, %c0_5] : memref<1x128xf32, #tpu.memory_space<vmem>>, vector<1x128xf32>
    %5 = vector.broadcast %4 : vector<1x128xf32> to vector<256x128xf32>
    %6 = arith.addf %3, %5 : vector<256x128xf32>
    %7 = vector.shape_cast %6 : vector<256x128xf32> to vector<1x16x16x128xf32>
    %c0_6 = arith.constant 0 : index
    %c0_7 = arith.constant 0 : index
    %c0_8 = arith.constant 0 : index
    %c0_9 = arith.constant 0 : index
    %8 = vector.load %arg11[%c0_6, %c0_7, %c0_8, %c0_9] : memref<1x16x16x128xf32, #tpu.memory_space<vmem>>, vector<1x16x16x128xf32>
    tpu.vector_store %arg11[%c0_6, %c0_7, %c0_8, %c0_9], %7 {strides = array<i32>} : memref<1x16x16x128xf32, #tpu.memory_space<vmem>>, vector<1x16x16x128xf32>,
    %c0_10 = arith.constant 0 : index
    %c0_11 = arith.constant 0 : index
    %c0_12 = arith.constant 0 : index
    %9 = vector.load %arg2[%c0_10, %c0_11, %c0_12] : memref<1x16x96xbf16, #tpu.memory_space<vmem>>, vector<1x16x96xbf16>
    %10 = vector.shape_cast %9 : vector<1x16x96xbf16> to vector<16x96xbf16>
    %c0_13 = arith.constant 0 : index
    %c0_14 = arith.constant 0 : index
    %c0_15 = arith.constant 0 : index
    %11 = vector.load %arg8[%c0_13, %c0_14, %c0_15] : memref<4x96x128xbf16, #tpu.memory_space<vmem>>, vector<1x96x128xbf16>
    %12 = vector.shape_cast %11 : vector<1x96x128xbf16> to vector<96x128xbf16>
    %cst_16 = arith.constant dense<0.000000e+00> : vector<16x128xf32>
    %13 = tpu.matmul %10, %12, %cst_16 {dimension_numbers = #tpu.dot_dimension_numbers<[1], [0], [0], [1], [0, 0, 1, 1], [], []>} : vector<16x96xbf16>, vector<96x128xbf16>, vector<16x128xf32> -> vector<16x128xf32>
    %14 = vector.shape_cast %13 : vector<16x128xf32> to vector<1x16x128xf32>
    %c0_17 = arith.constant 0 : index
    %c0_18 = arith.constant 0 : index
    %c0_19 = arith.constant 0 : index
    %15 = vector.load %arg3[%c0_17, %c0_18, %c0_19] : memref<1x16x96xbf16, #tpu.memory_space<vmem>>, vector<1x16x96xbf16>
    %16 = vector.shape_cast %15 : vector<1x16x96xbf16> to vector<16x96xbf16>
    %c1 = arith.constant 1 : index
    %c0_20 = arith.constant 0 : index
    %c0_21 = arith.constant 0 : index
    %17 = vector.load %arg8[%c1, %c0_20, %c0_21] : memref<4x96x128xbf16, #tpu.memory_space<vmem>>, vector<1x96x128xbf16>
    %18 = vector.shape_cast %17 : vector<1x96x128xbf16> to vector<96x128xbf16>
    %cst_22 = arith.constant dense<0.000000e+00> : vector<16x128xf32>
    %19 = tpu.matmul %16, %18, %cst_22 {dimension_numbers = #tpu.dot_dimension_numbers<[1], [0], [0], [1], [0, 0, 1, 1], [], []>} : vector<16x96xbf16>, vector<96x128xbf16>, vector<16x128xf32> -> vector<16x128xf32>
    %20 = vector.shape_cast %19 : vector<16x128xf32> to vector<1x16x128xf32>
    %c0_23 = arith.constant 0 : index
    %c0_24 = arith.constant 0 : index
    %c0_25 = arith.constant 0 : index
    %21 = vector.load %arg4[%c0_23, %c0_24, %c0_25] : memref<1x16x96xbf16, #tpu.memory_space<vmem>>, vector<1x16x96xbf16>
    %22 = vector.shape_cast %21 : vector<1x16x96xbf16> to vector<16x96xbf16>
    %c2 = arith.constant 2 : index
    %c0_26 = arith.constant 0 : index
    %c0_27 = arith.constant 0 : index
    %23 = vector.load %arg8[%c2, %c0_26, %c0_27] : memref<4x96x128xbf16, #tpu.memory_space<vmem>>, vector<1x96x128xbf16>
    %24 = vector.shape_cast %23 : vector<1x96x128xbf16> to vector<96x128xbf16>
    %cst_28 = arith.constant dense<0.000000e+00> : vector<16x128xf32>
    %25 = tpu.matmul %22, %24, %cst_28 {dimension_numbers = #tpu.dot_dimension_numbers<[1], [0], [0], [1], [0, 0, 1, 1], [], []>} : vector<16x96xbf16>, vector<96x128xbf16>, vector<16x128xf32> -> vector<16x128xf32>
    %26 = vector.shape_cast %25 : vector<16x128xf32> to vector<1x16x128xf32>
    %c0_29 = arith.constant 0 : index
    %c0_30 = arith.constant 0 : index
    %c0_31 = arith.constant 0 : index
    %27 = vector.load %arg5[%c0_29, %c0_30, %c0_31] : memref<1x16x96xbf16, #tpu.memory_space<vmem>>, vector<1x16x96xbf16>
    %28 = vector.shape_cast %27 : vector<1x16x96xbf16> to vector<16x96xbf16>
    %c3 = arith.constant 3 : index
    %c0_32 = arith.constant 0 : index
    %c0_33 = arith.constant 0 : index
    %29 = vector.load %arg8[%c3, %c0_32, %c0_33] : memref<4x96x128xbf16, #tpu.memory_space<vmem>>, vector<1x96x128xbf16>
    %30 = vector.shape_cast %29 : vector<1x96x128xbf16> to vector<96x128xbf16>
    %cst_34 = arith.constant dense<0.000000e+00> : vector<16x128xf32>
    %31 = tpu.matmul %28, %30, %cst_34 {dimension_numbers = #tpu.dot_dimension_numbers<[1], [0], [0], [1], [0, 0, 1, 1], [], []>} : vector<16x96xbf16>, vector<96x128xbf16>, vector<16x128xf32> -> vector<16x128xf32>
    %32 = vector.shape_cast %31 : vector<16x128xf32> to vector<1x16x128xf32>
    %c0_35 = arith.constant 0 : index
    %c0_36 = arith.constant 0 : index
    %c0_37 = arith.constant 0 : index
    %33 = vector.load %arg6[%c0_35, %c0_36, %c0_37] : memref<1x1x128xbf16, #tpu.memory_space<vmem>>, vector<1x1x128xbf16>
    %34 = vector.shape_cast %33 : vector<1x1x128xbf16> to vector<1x128xbf16>
    %c0_38 = arith.constant 0 : index
    %c0_39 = arith.constant 0 : index
    %35 = vector.load %arg9[%c0_38, %c0_39] : memref<128x128xbf16, #tpu.memory_space<vmem>>, vector<128x128xbf16>
    %cst_40 = arith.constant dense<0.000000e+00> : vector<1x128xf32>
    %36 = tpu.matmul %34, %35, %cst_40 {dimension_numbers = #tpu.dot_dimension_numbers<[1], [0], [0], [1], [0, 0, 1, 1], [], []>} : vector<1x128xbf16>, vector<128x128xbf16>, vector<1x128xf32> -> vector<1x128xf32>
    %37 = tpu.iota {dimensions = array<i32: 1>} : vector<1x16x128xi32>
    %38 = tpu.iota {dimensions = array<i32: 2>} : vector<1x16x128xi32>
    %c0_i32 = arith.constant 0 : i32
    %39 = vector.broadcast %c0_i32 : i32 to vector<1x16x128xi32>
    %40 = arith.cmpi eq, %37, %39 : vector<1x16x128xi32>
    %c15_i32 = arith.constant 15 : i32
    %41 = vector.broadcast %c15_i32 : i32 to vector<1x16x128xi32>
    %42 = arith.cmpi eq, %37, %41 : vector<1x16x128xi32>
    %c32_i32 = arith.constant 32 : i32
    %43 = vector.broadcast %c32_i32 : i32 to vector<1x16x128xi32>
    %44 = arith.cmpi slt, %38, %43 : vector<1x16x128xi32>
    %45 = arith.andi %40, %44 : vector<1x16x128xi1>
    %c32_i32_41 = arith.constant 32 : i32
    %46 = vector.broadcast %c32_i32_41 : i32 to vector<1x16x128xi32>
    %47 = arith.cmpi sge, %38, %46 : vector<1x16x128xi32>
    %48 = arith.andi %42, %47 : vector<1x16x128xi1>
    %c64_i32 = arith.constant 64 : i32
    %49 = vector.broadcast %c64_i32 : i32 to vector<1x16x128xi32>
    %50 = arith.cmpi slt, %38, %49 : vector<1x16x128xi32>
    %51 = arith.andi %48, %50 : vector<1x16x128xi1>
    %52 = arith.ori %45, %51 : vector<1x16x128xi1>
    %c64_i32_42 = arith.constant 64 : i32
    %53 = vector.broadcast %c64_i32_42 : i32 to vector<1x16x128xi32>
    %54 = arith.cmpi sge, %38, %53 : vector<1x16x128xi32>
    %55 = arith.andi %40, %54 : vector<1x16x128xi1>
    %c96_i32 = arith.constant 96 : i32
    %56 = vector.broadcast %c96_i32 : i32 to vector<1x16x128xi32>
    %57 = arith.cmpi slt, %38, %56 : vector<1x16x128xi32>
    %58 = arith.andi %55, %57 : vector<1x16x128xi1>
    %c96_i32_43 = arith.constant 96 : i32
    %59 = vector.broadcast %c96_i32_43 : i32 to vector<1x16x128xi32>
    %60 = arith.cmpi sge, %38, %59 : vector<1x16x128xi32>
    %61 = arith.andi %42, %60 : vector<1x16x128xi1>
    %62 = arith.ori %58, %61 : vector<1x16x128xi1>
    %63 = vector.shape_cast %36 : vector<1x128xf32> to vector<1x1x128xf32>
    %cst_44 = arith.constant 0.000000e+00 : f32
    %64 = vector.shape_cast %63 : vector<1x1x128xf32> to vector<1x1x128xf32>
    %65 = vector.broadcast %64 : vector<1x1x128xf32> to vector<1x16x128xf32>
    %66 = vector.broadcast %cst_44 : f32 to vector<1x16x128xf32>
    %67 = arith.select %52, %65, %66 : vector<1x16x128xi1>, vector<1x16x128xf32>
    %68 = arith.subf %14, %67 : vector<1x16x128xf32>
    %69 = vector.shape_cast %36 : vector<1x128xf32> to vector<1x1x128xf32>
    %cst_45 = arith.constant 0.000000e+00 : f32
    %70 = vector.shape_cast %69 : vector<1x1x128xf32> to vector<1x1x128xf32>
    %71 = vector.broadcast %70 : vector<1x1x128xf32> to vector<1x16x128xf32>
    %72 = vector.broadcast %cst_45 : f32 to vector<1x16x128xf32>
    %73 = arith.select %62, %71, %72 : vector<1x16x128xi1>, vector<1x16x128xf32>
    %74 = arith.subf %20, %73 : vector<1x16x128xf32>
    %c0_46 = arith.constant 0 : index
    %c0_47 = arith.constant 0 : index
    %c0_48 = arith.constant 0 : index
    %c0_49 = arith.constant 0 : index
    %75 = vector.load %arg11[%c0_46, %c0_47, %c0_48, %c0_49] : memref<1x16x16x128xf32, #tpu.memory_space<vmem>>, vector<1x1x16x128xf32>
    %76 = vector.shape_cast %68 : vector<1x16x128xf32> to vector<1x1x16x128xf32>
    %77 = arith.subf %75, %76 : vector<1x1x16x128xf32>
    %c0_50 = arith.constant 0 : index
    %c0_51 = arith.constant 0 : index
    %c0_52 = arith.constant 0 : index
    %c0_53 = arith.constant 0 : index
    %78 = vector.load %arg11[%c0_50, %c0_51, %c0_52, %c0_53] : memref<1x16x16x128xf32, #tpu.memory_space<vmem>>, vector<1x1x16x128xf32>
    tpu.vector_store %arg11[%c0_50, %c0_51, %c0_52, %c0_53], %77 {strides = array<i32>} : memref<1x16x16x128xf32, #tpu.memory_space<vmem>>, vector<1x1x16x128xf32>,
    %c0_54 = arith.constant 0 : index
    %c15 = arith.constant 15 : index
    %c0_55 = arith.constant 0 : index
    %c0_56 = arith.constant 0 : index
    %79 = vector.load %arg11[%c0_54, %c15, %c0_55, %c0_56] : memref<1x16x16x128xf32, #tpu.memory_space<vmem>>, vector<1x1x16x128xf32>
    %80 = vector.shape_cast %74 : vector<1x16x128xf32> to vector<1x1x16x128xf32>
    %81 = arith.subf %79, %80 : vector<1x1x16x128xf32>
    %c0_57 = arith.constant 0 : index
    %c15_58 = arith.constant 15 : index
    %c0_59 = arith.constant 0 : index
    %c0_60 = arith.constant 0 : index
    %82 = vector.load %arg11[%c0_57, %c15_58, %c0_59, %c0_60] : memref<1x16x16x128xf32, #tpu.memory_space<vmem>>, vector<1x1x16x128xf32>
    tpu.vector_store %arg11[%c0_57, %c15_58, %c0_59, %c0_60], %81 {strides = array<i32>} : memref<1x16x16x128xf32, #tpu.memory_space<vmem>>, vector<1x1x16x128xf32>,
    %c0_61 = arith.constant 0 : index
    %c0_62 = arith.constant 0 : index
    %c0_63 = arith.constant 0 : index
    %c0_64 = arith.constant 0 : index
    %83 = vector.load %arg11[%c0_61, %c0_62, %c0_63, %c0_64] : memref<1x16x16x128xf32, #tpu.memory_space<vmem>>, vector<1x16x1x128xf32>
    %84 = vector.shape_cast %26 : vector<1x16x128xf32> to vector<1x16x1x128xf32>
    %85 = arith.subf %83, %84 : vector<1x16x1x128xf32>
    %c0_65 = arith.constant 0 : index
    %c0_66 = arith.constant 0 : index
    %c0_67 = arith.constant 0 : index
    %c0_68 = arith.constant 0 : index
    %86 = vector.load %arg11[%c0_65, %c0_66, %c0_67, %c0_68] : memref<1x16x16x128xf32, #tpu.memory_space<vmem>>, vector<1x16x1x128xf32>
    tpu.vector_store %arg11[%c0_65, %c0_66, %c0_67, %c0_68], %85 {strides = array<i32>} : memref<1x16x16x128xf32, #tpu.memory_space<vmem>>, vector<1x16x1x128xf32>,
    %c0_69 = arith.constant 0 : index
    %c0_70 = arith.constant 0 : index
    %c15_71 = arith.constant 15 : index
    %c0_72 = arith.constant 0 : index
    %87 = vector.load %arg11[%c0_69, %c0_70, %c15_71, %c0_72] : memref<1x16x16x128xf32, #tpu.memory_space<vmem>>, vector<1x16x1x128xf32>
    %88 = vector.shape_cast %32 : vector<1x16x128xf32> to vector<1x16x1x128xf32>
    %89 = arith.subf %87, %88 : vector<1x16x1x128xf32>
    %c0_73 = arith.constant 0 : index
    %c0_74 = arith.constant 0 : index
    %c15_75 = arith.constant 15 : index
    %c0_76 = arith.constant 0 : index
    %90 = vector.load %arg11[%c0_73, %c0_74, %c15_75, %c0_76] : memref<1x16x16x128xf32, #tpu.memory_space<vmem>>, vector<1x16x1x128xf32>
    tpu.vector_store %arg11[%c0_73, %c0_74, %c15_75, %c0_76], %89 {strides = array<i32>} : memref<1x16x16x128xf32, #tpu.memory_space<vmem>>, vector<1x16x1x128xf32>,
    return
  }
  func.func @transform_0(%arg0: i32) -> (i32, i32, i32) {
    %c0_i32 = arith.constant 0 : i32
    %c0_i32_0 = arith.constant 0 : i32
    %c0_i32_1 = arith.constant 0 : i32
    return %arg0, %c0_i32, %c0_i32_0 : i32, i32, i32
  }
  func.func @transform_1(%arg0: i32) -> (i32, i32, i32) {
    %c0_i32 = arith.constant 0 : i32
    %c0_i32_0 = arith.constant 0 : i32
    %c0_i32_1 = arith.constant 0 : i32
    return %arg0, %c0_i32, %c0_i32_0 : i32, i32, i32
  }
  func.func @transform_2(%arg0: i32) -> (i32, i32, i32) {
    %c0_i32 = arith.constant 0 : i32
    %c0_i32_0 = arith.constant 0 : i32
    %c0_i32_1 = arith.constant 0 : i32
    return %arg0, %c0_i32, %c0_i32_0 : i32, i32, i32
  }
  func.func @transform_3(%arg0: i32) -> (i32, i32, i32) {
    %c0_i32 = arith.constant 0 : i32
    %c0_i32_0 = arith.constant 0 : i32
    %c0_i32_1 = arith.constant 0 : i32
    return %arg0, %c0_i32, %c0_i32_0 : i32, i32, i32
  }
  func.func @transform_4(%arg0: i32) -> (i32, i32, i32) {
    %c0_i32 = arith.constant 0 : i32
    %c0_i32_0 = arith.constant 0 : i32
    %c0_i32_1 = arith.constant 0 : i32
    return %arg0, %c0_i32, %c0_i32_0 : i32, i32, i32
  }
  func.func @transform_5(%arg0: i32) -> (i32, i32, i32) {
    %c0_i32 = arith.constant 0 : i32
    %c0_i32_0 = arith.constant 0 : i32
    %c0_i32_1 = arith.constant 0 : i32
    return %arg0, %c0_i32, %c0_i32_0 : i32, i32, i32
  }
  func.func @transform_6(%arg0: i32) -> (i32, i32) {
    %c0_i32 = arith.constant 0 : i32
    %c0_i32_0 = arith.constant 0 : i32
    %c0_i32_1 = arith.constant 0 : i32
    return %c0_i32, %c0_i32_0 : i32, i32
  }
  func.func @transform_7(%arg0: i32) -> (i32, i32, i32) {
    %c0_i32 = arith.constant 0 : i32
    %c0_i32_0 = arith.constant 0 : i32
    %c0_i32_1 = arith.constant 0 : i32
    %c0_i32_2 = arith.constant 0 : i32
    return %c0_i32, %c0_i32_0, %c0_i32_1 : i32, i32, i32
  }
  func.func @transform_8(%arg0: i32) -> (i32, i32) {
    %c0_i32 = arith.constant 0 : i32
    %c0_i32_0 = arith.constant 0 : i32
    %c0_i32_1 = arith.constant 0 : i32
    return %c0_i32, %c0_i32_0 : i32, i32
  }
  func.func @transform_9(%arg0: i32) -> (i32, i32) {
    %c0_i32 = arith.constant 0 : i32
    %c0_i32_0 = arith.constant 0 : i32
    %c0_i32_1 = arith.constant 0 : i32
    return %c0_i32, %c0_i32_0 : i32, i32
  }
  func.func @transform_10(%arg0: i32) -> (i32, i32, i32, i32) {
    %c0_i32 = arith.constant 0 : i32
    %c0_i32_0 = arith.constant 0 : i32
    %c0_i32_1 = arith.constant 0 : i32
    %c0_i32_2 = arith.constant 0 : i32
    return %arg0, %c0_i32, %c0_i32_0, %c0_i32_1 : i32, i32, i32, i32
  }
}

</mosaic_0001>

<llo_original>
// kernel: tile.8
$region0: #{tile.8}
  #allocation0 [shape = 's32[1]{0}', space=sflag, size = 0x4, scoped, tag = 'scoped memory for tile.8']
  %s0 = inlined_call_operand.vmem [shape: f32[32], index: 0, kind: input, shape index: {}]
  %s1 = inlined_call_operand.vmem [shape: f32[4,32], index: 1, kind: output, shape index: {}]
  // Predicated region
  $region2: #{tile.8} parent=0 // pred_check
    _
  $region3: #{tile.8} parent=0 // pred_check_branch
    %3 = sbr.rel (0) target = $region5
  $region4: #{tile.8} parent=0 // pred_region
    _
  $region5: #{tile.8} parent=0 // pred_fallthru
    _
  %v4 = vld [vmem:[%s0] ss:$0 sm:$0xff]
  %5 = vst [vmem:[%s1] sm:$0xf] %v4

// kernel: tile.9
$region0: #{tile.9}
  %s0 = inlined_call_operand.vmem [shape: f32[4,32], index: 0, kind: input, shape index: {}]
  %s1 = inlined_call_operand.vmem [shape: f32[1,128], index: 1, kind: output, shape index: {}]
  $region1: #{tile.9} parent=0
    #allocation0 [shape = 'u8[4096]{0}', space=vmem, size = 0x1000, scoped, tag = 'scoped mem for output reshape']
    #allocation1 [shape = 'u8[4096]{0}', space=vmem, size = 0x1000, scoped, tag = 'scoped mem for input reshape']
    %s3 = sshllo.u32 0, 4
    %v4 = vld [vmem:[%s0] sm:%s3]
    %5 = vst [vmem:[#allocation1] sm:%s3] %v4
    %v6 = vld [vmem:[#allocation1] sm:$0x1]
    %vm7 = vcmask 261120
    %8 = vst.msk [vmem:[#allocation0] sm:$0x1] %vm7, %v6
    %s9 = scalar_lea.vmem [#allocation1], 3
    %v10 = vld [vmem:[%s9] sm:$0x1]
    %11 = vrot.lane.b32.xlu0 %v10, 96
    %v12 = vpop.permute.xlu0 %11
    %vm13 = vcmask 1048320
    %14 = vst.msk [vmem:[#allocation0] sm:$0x1] %vm13, %v12
    %s15 = scalar_lea.vmem [#allocation1], 2
    %v16 = vld [vmem:[%s15] sm:$0x1]
    %17 = vrot.lane.b32.xlu0 %v16, 64
    %v18 = vpop.permute.xlu0 %17
    %vm19 = vcmask 785920
    %20 = vst.msk [vmem:[#allocation0] sm:$0x1] %vm19, %v18
    %s21 = scalar_lea.vmem [#allocation1], 1
    %v22 = vld [vmem:[%s21] sm:$0x1]
    %23 = vrot.lane.b32.xlu0 %v22, 32
    %v24 = vpop.permute.xlu0 %23
    %vm25 = vcmask 523520
    %26 = vst.msk [vmem:[#allocation0] sm:$0x1] %vm25, %v24
    %s28 = sshllo.u32 0, 1
    %v30 = vld [vmem:[#allocation0] sm:%s28]
    %s31 = sshllo.u32 0, 1
    %32 = vst [vmem:[%s1] sm:%s31] %v30

// kernel: ray_upsampler_forward.1
$region0: #{ray_upsampler_forward.1}
  #allocation0 [shape = 'u32[]', space=smem, size = 0x4, offset = 0x4, fixed_abs, tag = 'smem constant byte address 0x4 - core index']
  #allocation1 [shape = 'u32[144,128]{1,0:T(1,128)}', space=vmem, size = 0x12000, scoped, tag = 'internal scratch']
  %s0 = inlined_call_operand.vmem [shape: bf16[2,256,288], index: 0, kind: input, shape index: {}]
  %s1 = inlined_call_operand.vmem [shape: bf16[2,16,96], index: 1, kind: input, shape index: {}]
  %s2 = inlined_call_operand.vmem [shape: bf16[2,16,96], index: 2, kind: input, shape index: {}]
  %s3 = inlined_call_operand.vmem [shape: bf16[2,16,96], index: 3, kind: input, shape index: {}]
  %s4 = inlined_call_operand.vmem [shape: bf16[2,16,96], index: 4, kind: input, shape index: {}]
  %s5 = inlined_call_operand.vmem [shape: bf16[2,1,128], index: 5, kind: input, shape index: {}]
  %s6 = inlined_call_operand.vmem [shape: bf16[288,128], index: 6, kind: input, shape index: {}]
  %s7 = inlined_call_operand.vmem [shape: bf16[4,96,128], index: 7, kind: input, shape index: {}]
  %s8 = inlined_call_operand.vmem [shape: bf16[128,128], index: 8, kind: input, shape index: {}]
  %s9 = inlined_call_operand.vmem [shape: f32[1,128], index: 9, kind: input, shape index: {}]
  %s10 = inlined_call_operand.vmem [shape: f32[2,16,16,128], index: 10, kind: output, shape index: {}]
  %s11 = sld [smem:[#allocation0]]
  $region73: #{ray_upsampler_forward.1} parent=0
    _
  %s13 = ssub.s32 1, %s11
  %s14 = scalar_select 0, %s13, %s11
  loop: start=0, step=1, limit=4
  $region2: #{ray_upsampler_forward.1} parent=0 // loop_pre_header
    _
  $region3: #{ray_upsampler_forward.1} parent=0 // loop_header
    %s16 = sphi 0, %s20
    %p17 = scmp.ge.s32.totalorder %s16, 4
    %s26 = sphi 0, %s28
    %s29 = sphi 0, %s26
    %s30 = sphi 0, %s29
    %s46 = sphi 0, %s30
    %s52 = sphi 0, %s54
    %s55 = sphi 0, %s52
    %s56 = sphi 0, %s55
    %s72 = sphi 0, %s56
    %s78 = sphi 0, %s80
    %s81 = sphi 0, %s78
    %s82 = sphi 0, %s81
    %s98 = sphi 0, %s82
    %s104 = sphi 0, %s106
    %s107 = sphi 0, %s104
    %s108 = sphi 0, %s107
    %s124 = sphi 0, %s108
    %s130 = sphi 0, %s132
    %s133 = sphi 0, %s130
    %s134 = sphi 0, %s133
    %s150 = sphi 0, %s134
    %s156 = sphi 0, %s158
    %s159 = sphi 0, %s156
    %s160 = sphi 0, %s159
    %s176 = sphi 0, %s160
    %s180 = sphi 0, %s180
    %s182 = sphi 0, %s180
    %s183 = sphi 0, %s182
    %s197 = sphi 0, %s183
    %s201 = sphi 0, %s201
    %s203 = sphi 0, %s201
    %s204 = sphi 0, %s203
    %s218 = sphi 0, %s204
    %s222 = sphi 0, %s222
    %s224 = sphi 0, %s222
    %s225 = sphi 0, %s224
    %s239 = sphi 0, %s225
    %s243 = sphi 0, %s243
    %s245 = sphi 0, %s243
    %s246 = sphi 0, %s245
    %s260 = sphi 0, %s246
    %s266 = sphi 0, %s268
    %s269 = sphi 0, %s266
    %s270 = sphi 0, %s269
    %s286 = sphi 0, %s270
  $region4: #{ray_upsampler_forward.1} parent=0 // loop_header_branch
    %19 = sbr.rel (%p17) target = $region8
  $region5: #{ray_upsampler_forward.1} parent=0 // loop_body
    %s21 = ssub.s32 %s16, 1
    %s22 = ssub.s32 %s16, 2
    %s23 = sadd.s32 %s16, 1
    %s24 = ssub.s32 %s16, %s23
    %p25 = scmp.eq.s32.totalorder %s24, 0
    %s27 = sadd.s32 %s26, 1
    %s28 = scalar_select %p25, %s26, %s27
    %p31 = pneg %p25
    %p32 = scmp.eq.s32.totalorder %s16, 1
    %p33 = por %p31, %p32
    %p34 = scmp.ne.s32.totalorder %s26, %s29
    %p35 = scmp.eq.s32.totalorder %s16, 0
    %p36 = por %p34, %p35
    %p37 = scmp.ne.s32.totalorder %s26, %s29
    %p38 = scmp.eq.s32.totalorder %s21, 1
    %p39 = por %p37, %p38
    %p40 = scmp.ne.s32.totalorder %s29, %s30
    %p41 = scmp.eq.s32.totalorder %s21, 0
    %p42 = por %p40, %p41
    %p43 = scmp.ne.s32.totalorder %s29, %s30
    %p44 = scmp.eq.s32.totalorder %s22, 1
    %p45 = por %p43, %p44
    %p47 = scmp.ne.s32.totalorder %s30, %s46
    %p48 = scmp.eq.s32.totalorder %s22, 0
    %p49 = por %p47, %p48
    %s50 = ssub.s32 %s16, %s23
    %p51 = scmp.eq.s32.totalorder %s50, 0
    %s53 = sadd.s32 %s52, 1
    %s54 = scalar_select %p51, %s52, %s53
    %p57 = pneg %p51
    %p58 = scmp.eq.s32.totalorder %s16, 1
    %p59 = por %p57, %p58
    %p60 = scmp.ne.s32.totalorder %s52, %s55
    %p61 = scmp.eq.s32.totalorder %s16, 0
    %p62 = por %p60, %p61
    %p63 = scmp.ne.s32.totalorder %s52, %s55
    %p64 = scmp.eq.s32.totalorder %s21, 1
    %p65 = por %p63, %p64
    %p66 = scmp.ne.s32.totalorder %s55, %s56
    %p67 = scmp.eq.s32.totalorder %s21, 0
    %p68 = por %p66, %p67
    %p69 = scmp.ne.s32.totalorder %s55, %s56
    %p70 = scmp.eq.s32.totalorder %s22, 1
    %p71 = por %p69, %p70
    %p73 = scmp.ne.s32.totalorder %s56, %s72
    %p74 = scmp.eq.s32.totalorder %s22, 0
    %p75 = por %p73, %p74
    %s76 = ssub.s32 %s16, %s23
    %p77 = scmp.eq.s32.totalorder %s76, 0
    %s79 = sadd.s32 %s78, 1
    %s80 = scalar_select %p77, %s78, %s79
    %p83 = pneg %p77
    %p84 = scmp.eq.s32.totalorder %s16, 1
    %p85 = por %p83, %p84
    %p86 = scmp.ne.s32.totalorder %s78, %s81
    %p87 = scmp.eq.s32.totalorder %s16, 0
    %p88 = por %p86, %p87
    %p89 = scmp.ne.s32.totalorder %s78, %s81
    %p90 = scmp.eq.s32.totalorder %s21, 1
    %p91 = por %p89, %p90
    %p92 = scmp.ne.s32.totalorder %s81, %s82
    %p93 = scmp.eq.s32.totalorder %s21, 0
    %p94 = por %p92, %p93
    %p95 = scmp.ne.s32.totalorder %s81, %s82
    %p96 = scmp.eq.s32.totalorder %s22, 1
    %p97 = por %p95, %p96
    %p99 = scmp.ne.s32.totalorder %s82, %s98
    %p100 = scmp.eq.s32.totalorder %s22, 0
    %p101 = por %p99, %p100
    %s102 = ssub.s32 %s16, %s23
    %p103 = scmp.eq.s32.totalorder %s102, 0
    %s105 = sadd.s32 %s104, 1
    %s106 = scalar_select %p103, %s104, %s105
    %p109 = pneg %p103
    %p110 = scmp.eq.s32.totalorder %s16, 1
    %p111 = por %p109, %p110
    %p112 = scmp.ne.s32.totalorder %s104, %s107
    %p113 = scmp.eq.s32.totalorder %s16, 0
    %p114 = por %p112, %p113
    %p115 = scmp.ne.s32.totalorder %s104, %s107
    %p116 = scmp.eq.s32.totalorder %s21, 1
    %p117 = por %p115, %p116
    %p118 = scmp.ne.s32.totalorder %s107, %s108
    %p119 = scmp.eq.s32.totalorder %s21, 0
    %p120 = por %p118, %p119
    %p121 = scmp.ne.s32.totalorder %s107, %s108
    %p122 = scmp.eq.s32.totalorder %s22, 1
    %p123 = por %p121, %p122
    %p125 = scmp.ne.s32.totalorder %s108, %s124
    %p126 = scmp.eq.s32.totalorder %s22, 0
    %p127 = por %p125, %p126
    %s128 = ssub.s32 %s16, %s23
    %p129 = scmp.eq.s32.totalorder %s128, 0
    %s131 = sadd.s32 %s130, 1
    %s132 = scalar_select %p129, %s130, %s131
    %p135 = pneg %p129
    %p136 = scmp.eq.s32.totalorder %s16, 1
    %p137 = por %p135, %p136
    %p138 = scmp.ne.s32.totalorder %s130, %s133
    %p139 = scmp.eq.s32.totalorder %s16, 0
    %p140 = por %p138, %p139
    %p141 = scmp.ne.s32.totalorder %s130, %s133
    %p142 = scmp.eq.s32.totalorder %s21, 1
    %p143 = por %p141, %p142
    %p144 = scmp.ne.s32.totalorder %s133, %s134
    %p145 = scmp.eq.s32.totalorder %s21, 0
    %p146 = por %p144, %p145
    %p147 = scmp.ne.s32.totalorder %s133, %s134
    %p148 = scmp.eq.s32.totalorder %s22, 1
    %p149 = por %p147, %p148
    %p151 = scmp.ne.s32.totalorder %s134, %s150
    %p152 = scmp.eq.s32.totalorder %s22, 0
    %p153 = por %p151, %p152
    %s154 = ssub.s32 %s16, %s23
    %p155 = scmp.eq.s32.totalorder %s154, 0
    %s157 = sadd.s32 %s156, 1
    %s158 = scalar_select %p155, %s156, %s157
    %p161 = pneg %p155
    %p162 = scmp.eq.s32.totalorder %s16, 1
    %p163 = por %p161, %p162
    %p164 = scmp.ne.s32.totalorder %s156, %s159
    %p165 = scmp.eq.s32.totalorder %s16, 0
    %p166 = por %p164, %p165
    %p167 = scmp.ne.s32.totalorder %s156, %s159
    %p168 = scmp.eq.s32.totalorder %s21, 1
    %p169 = por %p167, %p168
    %p170 = scmp.ne.s32.totalorder %s159, %s160
    %p171 = scmp.eq.s32.totalorder %s21, 0
    %p172 = por %p170, %p171
    %p173 = scmp.ne.s32.totalorder %s159, %s160
    %p174 = scmp.eq.s32.totalorder %s22, 1
    %p175 = por %p173, %p174
    %p177 = scmp.ne.s32.totalorder %s160, %s176
    %p178 = scmp.eq.s32.totalorder %s22, 0
    %p179 = por %p177, %p178
    %s181 = sadd.s32 %s180, 1
    %p184 = scmp.eq.s32.totalorder %s16, 1
    %p185 = scmp.ne.s32.totalorder %s180, %s182
    %p186 = scmp.eq.s32.totalorder %s16, 0
    %p187 = por %p185, %p186
    %p188 = scmp.ne.s32.totalorder %s180, %s182
    %p189 = scmp.eq.s32.totalorder %s21, 1
    %p190 = por %p188, %p189
    %p191 = scmp.ne.s32.totalorder %s182, %s183
    %p192 = scmp.eq.s32.totalorder %s21, 0
    %p193 = por %p191, %p192
    %p194 = scmp.ne.s32.totalorder %s182, %s183
    %p195 = scmp.eq.s32.totalorder %s22, 1
    %p196 = por %p194, %p195
    %p198 = scmp.ne.s32.totalorder %s183, %s197
    %p199 = scmp.eq.s32.totalorder %s22, 0
    %p200 = por %p198, %p199
    %s202 = sadd.s32 %s201, 1
    %p205 = scmp.eq.s32.totalorder %s16, 1
    %p206 = scmp.ne.s32.totalorder %s201, %s203
    %p207 = scmp.eq.s32.totalorder %s16, 0
    %p208 = por %p206, %p207
    %p209 = scmp.ne.s32.totalorder %s201, %s203
    %p210 = scmp.eq.s32.totalorder %s21, 1
    %p211 = por %p209, %p210
    %p212 = scmp.ne.s32.totalorder %s203, %s204
    %p213 = scmp.eq.s32.totalorder %s21, 0
    %p214 = por %p212, %p213
    %p215 = scmp.ne.s32.totalorder %s203, %s204
    %p216 = scmp.eq.s32.totalorder %s22, 1
    %p217 = por %p215, %p216
    %p219 = scmp.ne.s32.totalorder %s204, %s218
    %p220 = scmp.eq.s32.totalorder %s22, 0
    %p221 = por %p219, %p220
    %s223 = sadd.s32 %s222, 1
    %p226 = scmp.eq.s32.totalorder %s16, 1
    %p227 = scmp.ne.s32.totalorder %s222, %s224
    %p228 = scmp.eq.s32.totalorder %s16, 0
    %p229 = por %p227, %p228
    %p230 = scmp.ne.s32.totalorder %s222, %s224
    %p231 = scmp.eq.s32.totalorder %s21, 1
    %p232 = por %p230, %p231
    %p233 = scmp.ne.s32.totalorder %s224, %s225
    %p234 = scmp.eq.s32.totalorder %s21, 0
    %p235 = por %p233, %p234
    %p236 = scmp.ne.s32.totalorder %s224, %s225
    %p237 = scmp.eq.s32.totalorder %s22, 1
    %p238 = por %p236, %p237
    %p240 = scmp.ne.s32.totalorder %s225, %s239
    %p241 = scmp.eq.s32.totalorder %s22, 0
    %p242 = por %p240, %p241
    %s244 = sadd.s32 %s243, 1
    %p247 = scmp.eq.s32.totalorder %s16, 1
    %p248 = scmp.ne.s32.totalorder %s243, %s245
    %p249 = scmp.eq.s32.totalorder %s16, 0
    %p250 = por %p248, %p249
    %p251 = scmp.ne.s32.totalorder %s243, %s245
    %p252 = scmp.eq.s32.totalorder %s21, 1
    %p253 = por %p251, %p252
    %p254 = scmp.ne.s32.totalorder %s245, %s246
    %p255 = scmp.eq.s32.totalorder %s21, 0
    %p256 = por %p254, %p255
    %p257 = scmp.ne.s32.totalorder %s245, %s246
    %p258 = scmp.eq.s32.totalorder %s22, 1
    %p259 = por %p257, %p258
    %p261 = scmp.ne.s32.totalorder %s246, %s260
    %p262 = scmp.eq.s32.totalorder %s22, 0
    %p263 = por %p261, %p262
    %s264 = ssub.s32 %s16, %s23
    %p265 = scmp.eq.s32.totalorder %s264, 0
    %s267 = sadd.s32 %s266, 1
    %s268 = scalar_select %p265, %s266, %s267
    %p271 = pneg %p265
    %p272 = scmp.eq.s32.totalorder %s16, 1
    %p273 = por %p271, %p272
    %p274 = scmp.ne.s32.totalorder %s266, %s269
    %p275 = scmp.eq.s32.totalorder %s16, 0
    %p276 = por %p274, %p275
    %p277 = scmp.ne.s32.totalorder %s266, %s269
    %p278 = scmp.eq.s32.totalorder %s21, 1
    %p279 = por %p277, %p278
    %p280 = scmp.ne.s32.totalorder %s269, %s270
    %p281 = scmp.eq.s32.totalorder %s21, 0
    %p282 = por %p280, %p281
    %p283 = scmp.ne.s32.totalorder %s269, %s270
    %p284 = scmp.eq.s32.totalorder %s22, 1
    %p285 = por %p283, %p284
    %p287 = scmp.ne.s32.totalorder %s270, %s286
    %p288 = scmp.eq.s32.totalorder %s22, 0
    %p289 = por %p287, %p288
    %p290 = scmp.le.s32.totalorder 1, %s16
    %p291 = scmp.lt.s32.totalorder %s16, 3
    %p292 = pnand %p290, %p291
    %p293 = pneg %p292
    // Predicated region
    $region9: #{ray_upsampler_forward.1} parent=5 // pred_check
      _
    $region10: #{ray_upsampler_forward.1} parent=5 // pred_check_branch
      %295 = sbr.rel (%p292) target = $region12
    $region11: #{ray_upsampler_forward.1} parent=5 // pred_region
      %s296 = ssub.s32 %s16, 1
      // Predicated region
      $region13: #{ray_upsampler_forward.1} parent=11 // pred_check
        %p297 = pneg %p193
      $region14: #{ray_upsampler_forward.1} parent=11 // pred_check_branch
        %299 = sbr.rel (%p297) target = $region16
      $region15: #{ray_upsampler_forward.1} parent=11 // pred_region
        _
      $region16: #{ray_upsampler_forward.1} parent=11 // pred_fallthru
        _
      // Predicated region
      $region17: #{ray_upsampler_forward.1} parent=11 // pred_check
        %p300 = pneg %p214
      $region18: #{ray_upsampler_forward.1} parent=11 // pred_check_branch
        %302 = sbr.rel (%p300) target = $region20
      $region19: #{ray_upsampler_forward.1} parent=11 // pred_region
        _
      $region20: #{ray_upsampler_forward.1} parent=11 // pred_fallthru
        _
      // Predicated region
      $region21: #{ray_upsampler_forward.1} parent=11 // pred_check
        %p303 = pneg %p235
      $region22: #{ray_upsampler_forward.1} parent=11 // pred_check_branch
        %305 = sbr.rel (%p303) target = $region24
      $region23: #{ray_upsampler_forward.1} parent=11 // pred_region
        _
      $region24: #{ray_upsampler_forward.1} parent=11 // pred_fallthru
        _
      // Predicated region
      $region25: #{ray_upsampler_forward.1} parent=11 // pred_check
        %p306 = pneg %p256
      $region26: #{ray_upsampler_forward.1} parent=11 // pred_check_branch
        %308 = sbr.rel (%p306) target = $region28
      $region27: #{ray_upsampler_forward.1} parent=11 // pred_region
        _
      $region28: #{ray_upsampler_forward.1} parent=11 // pred_fallthru
        _
    $region12: #{ray_upsampler_forward.1} parent=5 // pred_fallthru
      _
    %p309 = scmp.lt.s32.totalorder %s16, 2
    // Predicated region
    $region29: #{ray_upsampler_forward.1} parent=5 // pred_check
      %p310 = pneg %p309
    $region30: #{ray_upsampler_forward.1} parent=5 // pred_check_branch
      %312 = sbr.rel (%p310) target = $region32
    $region31: #{ray_upsampler_forward.1} parent=5 // pred_region
      // Predicated region
      $region33: #{ray_upsampler_forward.1} parent=31 // pred_check
        %p313 = pneg %p36
      $region34: #{ray_upsampler_forward.1} parent=31 // pred_check_branch
        %315 = sbr.rel (%p313) target = $region36
      $region35: #{ray_upsampler_forward.1} parent=31 // pred_region
        %p316 = scmp.lt.s32.totalorder %s16, 1
        %s317 = scalar_select %p316, %s16, 1
        %s318 = smul.addr %s317, 96
        %s319 = smul.addr %s318, 4
        %s320 = scalar_lea.vmem %s0, %s319
      $region36: #{ray_upsampler_forward.1} parent=31 // pred_fallthru
        _
      // Predicated region
      $region37: #{ray_upsampler_forward.1} parent=31 // pred_check
        %p321 = pneg %p62
      $region38: #{ray_upsampler_forward.1} parent=31 // pred_check_branch
        %323 = sbr.rel (%p321) target = $region40
      $region39: #{ray_upsampler_forward.1} parent=31 // pred_region
        %p324 = scmp.lt.s32.totalorder %s16, 1
        %s325 = scalar_select %p324, %s16, 1
        %s326 = smul.addr %s325, 2
        %s327 = smul.addr %s326, 4
        %s328 = scalar_lea.vmem %s1, %s327
      $region40: #{ray_upsampler_forward.1} parent=31 // pred_fallthru
        _
      // Predicated region
      $region41: #{ray_upsampler_forward.1} parent=31 // pred_check
        %p329 = pneg %p88
      $region42: #{ray_upsampler_forward.1} parent=31 // pred_check_branch
        %331 = sbr.rel (%p329) target = $region44
      $region43: #{ray_upsampler_forward.1} parent=31 // pred_region
        %p332 = scmp.lt.s32.totalorder %s16, 1
        %s333 = scalar_select %p332, %s16, 1
        %s334 = smul.addr %s333, 2
        %s335 = smul.addr %s334, 4
        %s336 = scalar_lea.vmem %s2, %s335
      $region44: #{ray_upsampler_forward.1} parent=31 // pred_fallthru
        _
      // Predicated region
      $region45: #{ray_upsampler_forward.1} parent=31 // pred_check
        %p337 = pneg %p114
      $region46: #{ray_upsampler_forward.1} parent=31 // pred_check_branch
        %339 = sbr.rel (%p337) target = $region48
      $region47: #{ray_upsampler_forward.1} parent=31 // pred_region
        %p340 = scmp.lt.s32.totalorder %s16, 1
        %s341 = scalar_select %p340, %s16, 1
        %s342 = smul.addr %s341, 2
        %s343 = smul.addr %s342, 4
        %s344 = scalar_lea.vmem %s3, %s343
      $region48: #{ray_upsampler_forward.1} parent=31 // pred_fallthru
        _
      // Predicated region
      $region49: #{ray_upsampler_forward.1} parent=31 // pred_check
        %p345 = pneg %p140
      $region50: #{ray_upsampler_forward.1} parent=31 // pred_check_branch
        %347 = sbr.rel (%p345) target = $region52
      $region51: #{ray_upsampler_forward.1} parent=31 // pred_region
        %p348 = scmp.lt.s32.totalorder %s16, 1
        %s349 = scalar_select %p348, %s16, 1
        %s350 = smul.addr %s349, 2
        %s351 = smul.addr %s350, 4
        %s352 = scalar_lea.vmem %s4, %s351
      $region52: #{ray_upsampler_forward.1} parent=31 // pred_fallthru
        _
      // Predicated region
      $region53: #{ray_upsampler_forward.1} parent=31 // pred_check
        %p353 = pneg %p166
      $region54: #{ray_upsampler_forward.1} parent=31 // pred_check_branch
        %355 = sbr.rel (%p353) target = $region56
      $region55: #{ray_upsampler_forward.1} parent=31 // pred_region
        %p356 = scmp.lt.s32.totalorder %s16, 1
        %s357 = scalar_select %p356, %s16, 1
        %s358 = scalar_lea.vmem %s5, %s357
      $region56: #{ray_upsampler_forward.1} parent=31 // pred_fallthru
        _
    $region32: #{ray_upsampler_forward.1} parent=5 // pred_fallthru
      _
    %p359 = scmp.le.s32.totalorder 1, %s16
    %p360 = scmp.lt.s32.totalorder %s16, 3
    %p361 = pnand %p359, %p360
    %p362 = pneg %p361
    // Predicated region
    $region57: #{ray_upsampler_forward.1} parent=5 // pred_check
      _
    $region58: #{ray_upsampler_forward.1} parent=5 // pred_check_branch
      %364 = sbr.rel (%p361) target = $region60
    $region59: #{ray_upsampler_forward.1} parent=5 // pred_region
      %s365 = ssub.s32 %s16, 1
      %p366 = scmp.lt.s32.totalorder %s21, 1
      %s367 = scalar_select %p366, %s21, 1
      %s368 = smul.addr %s367, 96
      %s369 = smul.addr %s368, 4
      %s370 = scalar_lea.vmem %s0, %s369
      %p371 = pneg %p42
      %p372 = pneg %p39
      %p373 = scmp.lt.s32.totalorder %s21, 1
      %s374 = scalar_select %p373, %s21, 1
      %s375 = smul.addr %s374, 2
      %s376 = smul.addr %s375, 4
      %s377 = scalar_lea.vmem %s1, %s376
      %p378 = pneg %p68
      %p379 = pneg %p65
      %p380 = scmp.lt.s32.totalorder %s21, 1
      %s381 = scalar_select %p380, %s21, 1
      %s382 = smul.addr %s381, 2
      %s383 = smul.addr %s382, 4
      %s384 = scalar_lea.vmem %s2, %s383
      %p385 = pneg %p94
      %p386 = pneg %p91
      %p387 = scmp.lt.s32.totalorder %s21, 1
      %s388 = scalar_select %p387, %s21, 1
      %s389 = smul.addr %s388, 2
      %s390 = smul.addr %s389, 4
      %s391 = scalar_lea.vmem %s3, %s390
      %p392 = pneg %p120
      %p393 = pneg %p117
      %p394 = scmp.lt.s32.totalorder %s21, 1
      %s395 = scalar_select %p394, %s21, 1
      %s396 = smul.addr %s395, 2
      %s397 = smul.addr %s396, 4
      %s398 = scalar_lea.vmem %s4, %s397
      %p399 = pneg %p146
      %p400 = pneg %p143
      %p401 = scmp.lt.s32.totalorder %s21, 1
      %s402 = scalar_select %p401, %s21, 1
      %s403 = scalar_lea.vmem %s5, %s402
      %p404 = pneg %p172
      %p405 = pneg %p169
      %p406 = pneg %p193
      %p407 = pneg %p190
      %p408 = pneg %p214
      %p409 = pneg %p211
      %p410 = pneg %p235
      %p411 = pneg %p232
      %p412 = pneg %p256
      %p413 = pneg %p253
      %p414 = pneg %p282
      %p415 = pneg %p279
      %p416 = scmp.lt.s32.totalorder %s21, 1
      %s417 = scalar_select %p416, %s21, 1
      %s418 = smul.addr %s417, 32
      %s419 = smul.addr %s418, 8
      %s420 = scalar_lea.vmem %s10, %s419
      %p421 = scmp.lt.s32.totalorder %s21, 1
      %s422 = scalar_select %p421, %s21, 1
      %s423 = smul.addr %s422, 96
      %s424 = smul.addr %s423, 4
      %s425 = scalar_lea.vmem %s0, %s424
      %p426 = scmp.lt.s32.totalorder %s21, 1
      %s427 = scalar_select %p426, %s21, 1
      %s428 = smul.addr %s427, 2
      %s429 = smul.addr %s428, 4
      %s430 = scalar_lea.vmem %s1, %s429
      %p431 = scmp.lt.s32.totalorder %s21, 1
      %s432 = scalar_select %p431, %s21, 1
      %s433 = smul.addr %s432, 2
      %s434 = smul.addr %s433, 4
      %s435 = scalar_lea.vmem %s2, %s434
      %p436 = scmp.lt.s32.totalorder %s21, 1
      %s437 = scalar_select %p436, %s21, 1
      %s438 = smul.addr %s437, 2
      %s439 = smul.addr %s438, 4
      %s440 = scalar_lea.vmem %s3, %s439
      %p441 = scmp.lt.s32.totalorder %s21, 1
      %s442 = scalar_select %p441, %s21, 1
      %s443 = smul.addr %s442, 2
      %s444 = smul.addr %s443, 4
      %s445 = scalar_lea.vmem %s4, %s444
      %p446 = scmp.lt.s32.totalorder %s21, 1
      %s447 = scalar_select %p446, %s21, 1
      %s448 = scalar_lea.vmem %s5, %s447
      %p449 = scmp.lt.s32.totalorder %s21, 1
      %s450 = scalar_select %p449, %s21, 1
      %s451 = smul.addr %s450, 32
      %s452 = smul.addr %s451, 8
      %s453 = scalar_lea.vmem %s10, %s452
      %v455 = vld [vmem:[%s425] sm:$0xff]
      %v456 = vld [vmem:[%s425 + $0x8] sm:$0xf]
      %v457 = vld [vmem:[%s425 + $0xc] sm:$0xff]
      %v458 = vld [vmem:[%s425 + $0x14] sm:$0xf]
      %v459 = vld [vmem:[%s425 + $0x18] sm:$0xff]
      %v460 = vld [vmem:[%s425 + $0x20] sm:$0xf]
      %v461 = vld [vmem:[%s425 + $0x24] sm:$0xff]
      %v462 = vld [vmem:[%s425 + $0x2c] sm:$0xf]
      %v463 = vld [vmem:[%s425 + $0x30] sm:$0xff]
      %v464 = vld [vmem:[%s425 + $0x38] sm:$0xf]
      %v465 = vld [vmem:[%s425 + $0x3c] sm:$0xff]
      %v466 = vld [vmem:[%s425 + $0x44] sm:$0xf]
      %v467 = vld [vmem:[%s425 + $0x48] sm:$0xff]
      %v468 = vld [vmem:[%s425 + $0x50] sm:$0xf]
      %v469 = vld [vmem:[%s425 + $0x54] sm:$0xff]
      %v470 = vld [vmem:[%s425 + $0x5c] sm:$0xf]
      %v471 = vld [vmem:[%s425 + $0x60] sm:$0xff]
      %v472 = vld [vmem:[%s425 + $0x68] sm:$0xf]
      %v473 = vld [vmem:[%s425 + $0x6c] sm:$0xff]
      %v474 = vld [vmem:[%s425 + $0x74] sm:$0xf]
      %v475 = vld [vmem:[%s425 + $0x78] sm:$0xff]
      %v476 = vld [vmem:[%s425 + $0x80] sm:$0xf]
      %v477 = vld [vmem:[%s425 + $0x84] sm:$0xff]
      %v478 = vld [vmem:[%s425 + $0x8c] sm:$0xf]
      %v479 = vld [vmem:[%s425 + $0x90] sm:$0xff]
      %v480 = vld [vmem:[%s425 + $0x98] sm:$0xf]
      %v481 = vld [vmem:[%s425 + $0x9c] sm:$0xff]
      %v482 = vld [vmem:[%s425 + $0xa4] sm:$0xf]
      %v483 = vld [vmem:[%s425 + $0xa8] sm:$0xff]
      %v484 = vld [vmem:[%s425 + $0xb0] sm:$0xf]
      %v485 = vld [vmem:[%s425 + $0xb4] sm:$0xff]
      %v486 = vld [vmem:[%s425 + $0xbc] sm:$0xf]
      %v487 = vld [vmem:[%s425 + $0xc0] sm:$0xff]
      %v488 = vld [vmem:[%s425 + $0xc8] sm:$0xf]
      %v489 = vld [vmem:[%s425 + $0xcc] sm:$0xff]
      %v490 = vld [vmem:[%s425 + $0xd4] sm:$0xf]
      %v491 = vld [vmem:[%s425 + $0xd8] sm:$0xff]
      %v492 = vld [vmem:[%s425 + $0xe0] sm:$0xf]
      %v493 = vld [vmem:[%s425 + $0xe4] sm:$0xff]
      %v494 = vld [vmem:[%s425 + $0xec] sm:$0xf]
      %v495 = vld [vmem:[%s425 + $0xf0] sm:$0xff]
      %v496 = vld [vmem:[%s425 + $0xf8] sm:$0xf]
      %v497 = vld [vmem:[%s425 + $0xfc] sm:$0xff]
      %v498 = vld [vmem:[%s425 + $0x104] sm:$0xf]
      %v499 = vld [vmem:[%s425 + $0x108] sm:$0xff]
      %v500 = vld [vmem:[%s425 + $0x110] sm:$0xf]
      %v501 = vld [vmem:[%s425 + $0x114] sm:$0xff]
      %v502 = vld [vmem:[%s425 + $0x11c] sm:$0xf]
      %v503 = vld [vmem:[%s425 + $0x120] sm:$0xff]
      %v504 = vld [vmem:[%s425 + $0x128] sm:$0xf]
      %v505 = vld [vmem:[%s425 + $0x12c] sm:$0xff]
      %v506 = vld [vmem:[%s425 + $0x134] sm:$0xf]
      %v507 = vld [vmem:[%s425 + $0x138] sm:$0xff]
      %v508 = vld [vmem:[%s425 + $0x140] sm:$0xf]
      %v509 = vld [vmem:[%s425 + $0x144] sm:$0xff]
      %v510 = vld [vmem:[%s425 + $0x14c] sm:$0xf]
      %v511 = vld [vmem:[%s425 + $0x150] sm:$0xff]
      %v512 = vld [vmem:[%s425 + $0x158] sm:$0xf]
      %v513 = vld [vmem:[%s425 + $0x15c] sm:$0xff]
      %v514 = vld [vmem:[%s425 + $0x164] sm:$0xf]
      %v515 = vld [vmem:[%s425 + $0x168] sm:$0xff]
      %v516 = vld [vmem:[%s425 + $0x170] sm:$0xf]
      %v517 = vld [vmem:[%s425 + $0x174] sm:$0xff]
      %v518 = vld [vmem:[%s425 + $0x17c] sm:$0xf]
      %v519 = vld [vmem:[%s6] sm:$0xf]
      %v520 = vld [vmem:[%s6 + $0x4] sm:$0xf]
      %v521 = vld [vmem:[%s6 + $0x8] sm:$0xf]
      %v522 = vld [vmem:[%s6 + $0xc] sm:$0xf]
      %v523 = vld [vmem:[%s6 + $0x10] sm:$0xf]
      %v524 = vld [vmem:[%s6 + $0x14] sm:$0xf]
      %v525 = vld [vmem:[%s6 + $0x18] sm:$0xf]
      %v526 = vld [vmem:[%s6 + $0x1c] sm:$0xf]
      %v527 = vld [vmem:[%s6 + $0x20] sm:$0xf]
      %v528 = vld [vmem:[%s6 + $0x24] sm:$0xf]
      %v529 = vld [vmem:[%s6 + $0x28] sm:$0xf]
      %v530 = vld [vmem:[%s6 + $0x2c] sm:$0xf]
      %v531 = vld [vmem:[%s6 + $0x30] sm:$0xf]
      %v532 = vld [vmem:[%s6 + $0x34] sm:$0xf]
      %v533 = vld [vmem:[%s6 + $0x38] sm:$0xf]
      %v534 = vld [vmem:[%s6 + $0x3c] sm:$0xf]
      %v535 = vld [vmem:[%s6 + $0x40] sm:$0xf]
      %v536 = vld [vmem:[%s6 + $0x44] sm:$0xf]
      %v537 = vld [vmem:[%s6 + $0x48] sm:$0xf]
      %v538 = vld [vmem:[%s6 + $0x4c] sm:$0xf]
      %v539 = vld [vmem:[%s6 + $0x50] sm:$0xf]
      %v540 = vld [vmem:[%s6 + $0x54] sm:$0xf]
      %v541 = vld [vmem:[%s6 + $0x58] sm:$0xf]
      %v542 = vld [vmem:[%s6 + $0x5c] sm:$0xf]
      %v543 = vld [vmem:[%s6 + $0x60] sm:$0xf]
      %v544 = vld [vmem:[%s6 + $0x64] sm:$0xf]
      %v545 = vld [vmem:[%s6 + $0x68] sm:$0xf]
      %v546 = vld [vmem:[%s6 + $0x6c] sm:$0xf]
      %v547 = vld [vmem:[%s6 + $0x70] sm:$0xf]
      %v548 = vld [vmem:[%s6 + $0x74] sm:$0xf]
      %v549 = vld [vmem:[%s6 + $0x78] sm:$0xf]
      %v550 = vld [vmem:[%s6 + $0x7c] sm:$0xf]
      %v551 = vld [vmem:[%s6 + $0x80] sm:$0xf]
      %v552 = vld [vmem:[%s6 + $0x84] sm:$0xf]
      %v553 = vld [vmem:[%s6 + $0x88] sm:$0xf]
      %v554 = vld [vmem:[%s6 + $0x8c] sm:$0xf]
      %v555 = vld [vmem:[%s9] sm:$0x1]
      %v557 = vlaneseq
      %v558 = vshrl.u32 %v557, 7
      %v559 = vsub.s32 0, %v558
      %v560 = vrot.slane %v555, %v559
      %v626 = vunpack.c.l.b16 %v455
      %v627 = vunpack.c.h.b16 %v455
      %v628 = vunpack.c.l.b16 %v456
      %v629 = vunpack.c.l.b16 %v457
      %v630 = vunpack.c.h.b16 %v457
      %v631 = vunpack.c.l.b16 %v458
      %v632 = vunpack.c.l.b16 %v459
      %v633 = vunpack.c.h.b16 %v459
      %v634 = vunpack.c.l.b16 %v460
      %v635 = vunpack.c.l.b16 %v461
      %v636 = vunpack.c.h.b16 %v461
      %v637 = vunpack.c.l.b16 %v462
      %v638 = vunpack.c.l.b16 %v463
      %v639 = vunpack.c.h.b16 %v463
      %v640 = vunpack.c.l.b16 %v464
      %v641 = vunpack.c.l.b16 %v465
      %v642 = vunpack.c.h.b16 %v465
      %v643 = vunpack.c.l.b16 %v466
      %v644 = vunpack.c.l.b16 %v467
      %v645 = vunpack.c.h.b16 %v467
      %v646 = vunpack.c.l.b16 %v468
      %v647 = vunpack.c.l.b16 %v469
      %v648 = vunpack.c.h.b16 %v469
      %v649 = vunpack.c.l.b16 %v470
      %v650 = vunpack.c.l.b16 %v471
      %v651 = vunpack.c.h.b16 %v471
      %v652 = vunpack.c.l.b16 %v472
      %v653 = vunpack.c.l.b16 %v473
      %v654 = vunpack.c.h.b16 %v473
      %v655 = vunpack.c.l.b16 %v474
      %v656 = vunpack.c.l.b16 %v475
      %v657 = vunpack.c.h.b16 %v475
      %v658 = vunpack.c.l.b16 %v476
      %v659 = vunpack.c.l.b16 %v477
      %v660 = vunpack.c.h.b16 %v477
      %v661 = vunpack.c.l.b16 %v478
      %v662 = vunpack.c.l.b16 %v479
      %v663 = vunpack.c.h.b16 %v479
      %v664 = vunpack.c.l.b16 %v480
      %v665 = vunpack.c.l.b16 %v481
      %v666 = vunpack.c.h.b16 %v481
      %v667 = vunpack.c.l.b16 %v482
      %v668 = vunpack.c.l.b16 %v483
      %v669 = vunpack.c.h.b16 %v483
      %v670 = vunpack.c.l.b16 %v484
      %v671 = vunpack.c.l.b16 %v485
      %v672 = vunpack.c.h.b16 %v485
      %v673 = vunpack.c.l.b16 %v486
      %v674 = vunpack.c.l.b16 %v487
      %v675 = vunpack.c.h.b16 %v487
      %v676 = vunpack.c.l.b16 %v488
      %v677 = vunpack.c.l.b16 %v489
      %v678 = vunpack.c.h.b16 %v489
      %v679 = vunpack.c.l.b16 %v490
      %v680 = vunpack.c.l.b16 %v491
      %v681 = vunpack.c.h.b16 %v491
      %v682 = vunpack.c.l.b16 %v492
      %v683 = vunpack.c.l.b16 %v493
      %v684 = vunpack.c.h.b16 %v493
      %v685 = vunpack.c.l.b16 %v494
      %v686 = vunpack.c.l.b16 %v495
      %v687 = vunpack.c.h.b16 %v495
      %v688 = vunpack.c.l.b16 %v496
      %v689 = vunpack.c.l.b16 %v497
      %v690 = vunpack.c.h.b16 %v497
      %v691 = vunpack.c.l.b16 %v498
      %v692 = vunpack.c.l.b16 %v499
      %v693 = vunpack.c.h.b16 %v499
      %v694 = vunpack.c.l.b16 %v500
      %v695 = vunpack.c.l.b16 %v501
      %v696 = vunpack.c.h.b16 %v501
      %v697 = vunpack.c.l.b16 %v502
      %v698 = vunpack.c.l.b16 %v503
      %v699 = vunpack.c.h.b16 %v503
      %v700 = vunpack.c.l.b16 %v504
      %v701 = vunpack.c.l.b16 %v505
      %v702 = vunpack.c.h.b16 %v505
      %v703 = vunpack.c.l.b16 %v506
      %v704 = vunpack.c.l.b16 %v507
      %v705 = vunpack.c.h.b16 %v507
      %v706 = vunpack.c.l.b16 %v508
      %v707 = vunpack.c.l.b16 %v509
      %v708 = vunpack.c.h.b16 %v509
      %v709 = vunpack.c.l.b16 %v510
      %v710 = vunpack.c.l.b16 %v511
      %v711 = vunpack.c.h.b16 %v511
      %v712 = vunpack.c.l.b16 %v512
      %v713 = vunpack.c.l.b16 %v513
      %v714 = vunpack.c.h.b16 %v513
      %v715 = vunpack.c.l.b16 %v514
      %v716 = vunpack.c.l.b16 %v515
      %v717 = vunpack.c.h.b16 %v515
      %v718 = vunpack.c.l.b16 %v516
      %v719 = vunpack.c.l.b16 %v517
      %v720 = vunpack.c.h.b16 %v517
      %v721 = vunpack.c.l.b16 %v518
      %v722 = vpack.c.b16 %v629, %v626
      %v723 = vpack.c.b16 %v630, %v627
      %v724 = vpack.c.b16 %v631, %v628
      %v725 = vpack.c.b16 %v635, %v632
      %v726 = vpack.c.b16 %v636, %v633
      %v727 = vpack.c.b16 %v637, %v634
      %v728 = vpack.c.b16 %v641, %v638
      %v729 = vpack.c.b16 %v642, %v639
      %v730 = vpack.c.b16 %v643, %v640
      %v731 = vpack.c.b16 %v647, %v644
      %v732 = vpack.c.b16 %v648, %v645
      %v733 = vpack.c.b16 %v649, %v646
      %v734 = vpack.c.b16 %v653, %v650
      %v735 = vpack.c.b16 %v654, %v651
      %v736 = vpack.c.b16 %v655, %v652
      %v737 = vpack.c.b16 %v659, %v656
      %v738 = vpack.c.b16 %v660, %v657
      %v739 = vpack.c.b16 %v661, %v658
      %v740 = vpack.c.b16 %v665, %v662
      %v741 = vpack.c.b16 %v666, %v663
      %v742 = vpack.c.b16 %v667, %v664
      %v743 = vpack.c.b16 %v671, %v668
      %v744 = vpack.c.b16 %v672, %v669
      %v745 = vpack.c.b16 %v673, %v670
      %v746 = vpack.c.b16 %v677, %v674
      %v747 = vpack.c.b16 %v678, %v675
      %v748 = vpack.c.b16 %v679, %v676
      %v749 = vpack.c.b16 %v683, %v680
      %v750 = vpack.c.b16 %v684, %v681
      %v751 = vpack.c.b16 %v685, %v682
      %v752 = vpack.c.b16 %v689, %v686
      %v753 = vpack.c.b16 %v690, %v687
      %v754 = vpack.c.b16 %v691, %v688
      %v755 = vpack.c.b16 %v695, %v692
      %v756 = vpack.c.b16 %v696, %v693
      %v757 = vpack.c.b16 %v697, %v694
      %v758 = vpack.c.b16 %v701, %v698
      %v759 = vpack.c.b16 %v702, %v699
      %v760 = vpack.c.b16 %v703, %v700
      %v761 = vpack.c.b16 %v707, %v704
      %v762 = vpack.c.b16 %v708, %v705
      %v763 = vpack.c.b16 %v709, %v706
      %v764 = vpack.c.b16 %v713, %v710
      %v765 = vpack.c.b16 %v714, %v711
      %v766 = vpack.c.b16 %v715, %v712
      %v767 = vpack.c.b16 %v719, %v716
      %v768 = vpack.c.b16 %v720, %v717
      %v769 = vpack.c.b16 %v721, %v718
      %v838 = vunpack.c.l.b16 %v519
      %v839 = vunpack.c.l.b16 %v520
      %v840 = vunpack.c.l.b16 %v521
      %v841 = vunpack.c.l.b16 %v522
      %v842 = vunpack.c.l.b16 %v523
      %v843 = vunpack.c.l.b16 %v524
      %v844 = vunpack.c.l.b16 %v525
      %v845 = vunpack.c.l.b16 %v526
      %v846 = vunpack.c.l.b16 %v527
      %v847 = vunpack.c.l.b16 %v528
      %v848 = vunpack.c.l.b16 %v529
      %v849 = vunpack.c.l.b16 %v530
      %v850 = vunpack.c.l.b16 %v531
      %v851 = vunpack.c.l.b16 %v532
      %v852 = vunpack.c.l.b16 %v533
      %v853 = vunpack.c.l.b16 %v534
      %v854 = vunpack.c.l.b16 %v535
      %v855 = vunpack.c.l.b16 %v536
      %v856 = vunpack.c.l.b16 %v537
      %v857 = vunpack.c.l.b16 %v538
      %v858 = vunpack.c.l.b16 %v539
      %v859 = vunpack.c.l.b16 %v540
      %v860 = vunpack.c.l.b16 %v541
      %v861 = vunpack.c.l.b16 %v542
      %v862 = vunpack.c.l.b16 %v543
      %v863 = vunpack.c.l.b16 %v544
      %v864 = vunpack.c.l.b16 %v545
      %v865 = vunpack.c.l.b16 %v546
      %v866 = vunpack.c.l.b16 %v547
      %v867 = vunpack.c.l.b16 %v548
      %v868 = vunpack.c.l.b16 %v549
      %v869 = vunpack.c.l.b16 %v550
      %v870 = vunpack.c.l.b16 %v551
      %v871 = vunpack.c.l.b16 %v552
      %v872 = vunpack.c.l.b16 %v553
      %v873 = vunpack.c.l.b16 %v554
      %v874 = vpack.c.b16 %v839, %v838
      %v875 = vpack.c.b16 %v841, %v840
      %v876 = vpack.c.b16 %v843, %v842
      %v877 = vpack.c.b16 %v845, %v844
      %v878 = vpack.c.b16 %v847, %v846
      %v879 = vpack.c.b16 %v849, %v848
      %v880 = vpack.c.b16 %v851, %v850
      %v881 = vpack.c.b16 %v853, %v852
      %v882 = vpack.c.b16 %v855, %v854
      %v883 = vpack.c.b16 %v857, %v856
      %v884 = vpack.c.b16 %v859, %v858
      %v885 = vpack.c.b16 %v861, %v860
      %v886 = vpack.c.b16 %v863, %v862
      %v887 = vpack.c.b16 %v865, %v864
      %v888 = vpack.c.b16 %v867, %v866
      %v889 = vpack.c.b16 %v869, %v868
      %v890 = vpack.c.b16 %v871, %v870
      %v891 = vpack.c.b16 %v873, %v872
      %vm910 = vcmask 261120
      %v912 = vsel %vm910, %v724, 0
      %v915 = vsel %vm910, %v727, 0
      %v918 = vsel %vm910, %v730, 0
      %v921 = vsel %vm910, %v733, 0
      %v924 = vsel %vm910, %v736, 0
      %v927 = vsel %vm910, %v739, 0
      %v930 = vsel %vm910, %v742, 0
      %v933 = vsel %vm910, %v745, 0
      %v936 = vsel %vm910, %v748, 0
      %v939 = vsel %vm910, %v751, 0
      %v942 = vsel %vm910, %v754, 0
      %v945 = vsel %vm910, %v757, 0
      %v948 = vsel %vm910, %v760, 0
      %v951 = vsel %vm910, %v763, 0
      %v954 = vsel %vm910, %v766, 0
      %v957 = vsel %vm910, %v769, 0
      %959 = vmatprep.subr.bf16.mxu0 0
      %960 = vmatpush1.bf16.msra.mxu0 %v874
      %961 = vmatprep.subr.bf16.mxu0 0
      %962 = vmatpush1.bf16.msra.mxu0 %v875
      %963 = vmatprep.subr.bf16.mxu0 0
      %964 = vmatpush1.bf16.msra.mxu0 %v876
      %965 = vmatprep.subr.bf16.mxu0 0
      %966 = vmatpush1.bf16.msra.mxu0 %v877
      %967 = vmatprep.subr.bf16.mxu0 0
      %968 = vmatpush1.bf16.msra.mxu0 %v878
      %969 = vmatprep.subr.bf16.mxu0 0
      %970 = vmatpush1.bf16.msra.mxu0 %v879
      %971 = vmatprep.subr.bf16.mxu0 0
      %972 = vmatpush1.bf16.msra.mxu0 %v880
      %973 = vmatprep.subr.bf16.mxu0 0
      %974 = vmatpush1.bf16.msra.mxu0 %v881
      %975 = vmatprep.subr.bf16.mxu0 0
      %976 = vmatpush1.bf16.msra.mxu0 %v882
      %977 = vmatprep.subr.bf16.mxu0 0
      %978 = vmatpush1.bf16.msra.mxu0 %v883
      %979 = vmatprep.subr.bf16.mxu0 0
      %980 = vmatpush1.bf16.msra.mxu0 %v884
      %981 = vmatprep.subr.bf16.mxu0 0
      %982 = vmatpush1.bf16.msra.mxu0 %v885
      %983 = vmatprep.subr.bf16.mxu0 0
      %984 = vmatpush1.bf16.msra.mxu0 %v886
      %985 = vmatprep.subr.bf16.mxu0 0
      %986 = vmatpush1.bf16.msra.mxu0 %v887
      %987 = vmatprep.subr.bf16.mxu0 0
      %988 = vmatpush1.bf16.msra.mxu0 %v888
      %989 = vmatprep.subr.bf16.mxu0 0
      %990 = vmatpush1.bf16.msra.mxu0 %v889
      %991 = vmatprep.mubr.bf16.mxu0 %v723
      %992 = vmatmul.mubr.bf16.gmra.mrb[0].mxu0 %v722
      %v993 = vpop.f32.mrb[0].mxu0
      %v994 = vadd.f32 %v560, %v993
      %v995 = vpop.f32.mrb[0].mxu0
      %v996 = vpop.f32.mrb[0].mxu0
      %v997 = vadd.f32 %v560, %v996
      %v998 = vpop.f32.mrb[0].mxu0
      %999 = vmatprep.mubr.bf16.mxu0 %v726
      %1000 = vmatmul.mubr.bf16.gmra.mrb[0].mxu0 %v725
      %v1001 = vpop.f32.mrb[0].mxu0
      %v1002 = vadd.f32 %v560, %v1001
      %v1003 = vpop.f32.mrb[0].mxu0
      %v1004 = vpop.f32.mrb[0].mxu0
      %v1005 = vadd.f32 %v560, %v1004
      %v1006 = vpop.f32.mrb[0].mxu0
      %1007 = vmatprep.mubr.bf16.mxu0 %v729
      %1008 = vmatmul.mubr.bf16.gmra.mrb[0].mxu0 %v728
      %v1009 = vpop.f32.mrb[0].mxu0
      %v1010 = vadd.f32 %v560, %v1009
      %v1011 = vpop.f32.mrb[0].mxu0
      %v1012 = vpop.f32.mrb[0].mxu0
      %v1013 = vadd.f32 %v560, %v1012
      %v1014 = vpop.f32.mrb[0].mxu0
      %1015 = vmatprep.mubr.bf16.mxu0 %v732
      %1016 = vmatmul.mubr.bf16.gmra.mrb[0].mxu0 %v731
      %v1017 = vpop.f32.mrb[0].mxu0
      %v1018 = vadd.f32 %v560, %v1017
      %v1019 = vpop.f32.mrb[0].mxu0
      %v1020 = vpop.f32.mrb[0].mxu0
      %v1021 = vadd.f32 %v560, %v1020
      %v1022 = vpop.f32.mrb[0].mxu0
      %1023 = vmatprep.mubr.bf16.mxu0 %v735
      %1024 = vmatmul.mubr.bf16.gmra.mrb[0].mxu0 %v734
      %v1025 = vpop.f32.mrb[0].mxu0
      %v1026 = vadd.f32 %v560, %v1025
      %v1027 = vpop.f32.mrb[0].mxu0
      %v1028 = vpop.f32.mrb[0].mxu0
      %v1029 = vadd.f32 %v560, %v1028
      %v1030 = vpop.f32.mrb[0].mxu0
      %1031 = vmatprep.mubr.bf16.mxu0 %v738
      %1032 = vmatmul.mubr.bf16.gmra.mrb[0].mxu0 %v737
      %v1033 = vpop.f32.mrb[0].mxu0
      %v1034 = vadd.f32 %v560, %v1033
      %v1035 = vpop.f32.mrb[0].mxu0
      %v1036 = vpop.f32.mrb[0].mxu0
      %v1037 = vadd.f32 %v560, %v1036
      %v1038 = vpop.f32.mrb[0].mxu0
      %1039 = vmatprep.mubr.bf16.mxu0 %v741
      %1040 = vmatmul.mubr.bf16.gmra.mrb[0].mxu0 %v740
      %v1041 = vpop.f32.mrb[0].mxu0
      %v1042 = vadd.f32 %v560, %v1041
      %v1043 = vpop.f32.mrb[0].mxu0
      %v1044 = vpop.f32.mrb[0].mxu0
      %v1045 = vadd.f32 %v560, %v1044
      %v1046 = vpop.f32.mrb[0].mxu0
      %1047 = vmatprep.mubr.bf16.mxu0 %v744
      %1048 = vmatmul.mubr.bf16.gmra.mrb[0].mxu0 %v743
      %v1049 = vpop.f32.mrb[0].mxu0
      %v1050 = vadd.f32 %v560, %v1049
      %v1051 = vpop.f32.mrb[0].mxu0
      %v1052 = vpop.f32.mrb[0].mxu0
      %v1053 = vadd.f32 %v560, %v1052
      %v1054 = vpop.f32.mrb[0].mxu0
      %1055 = vmatprep.mubr.bf16.mxu0 %v747
      %1056 = vmatmul.mubr.bf16.gmra.mrb[0].mxu0 %v746
      %v1057 = vpop.f32.mrb[0].mxu0
      %v1058 = vadd.f32 %v560, %v1057
      %v1059 = vpop.f32.mrb[0].mxu0
      %v1060 = vpop.f32.mrb[0].mxu0
      %v1061 = vadd.f32 %v560, %v1060
      %v1062 = vpop.f32.mrb[0].mxu0
      %1063 = vmatprep.mubr.bf16.mxu0 %v750
      %1064 = vmatmul.mubr.bf16.gmra.mrb[0].mxu0 %v749
      %v1065 = vpop.f32.mrb[0].mxu0
      %v1066 = vadd.f32 %v560, %v1065
      %v1067 = vpop.f32.mrb[0].mxu0
      %v1068 = vpop.f32.mrb[0].mxu0
      %v1069 = vadd.f32 %v560, %v1068
      %v1070 = vpop.f32.mrb[0].mxu0
      %1071 = vmatprep.mubr.bf16.mxu0 %v753
      %1072 = vmatmul.mubr.bf16.gmra.mrb[0].mxu0 %v752
      %v1073 = vpop.f32.mrb[0].mxu0
      %v1074 = vadd.f32 %v560, %v1073
      %v1075 = vpop.f32.mrb[0].mxu0
      %v1076 = vpop.f32.mrb[0].mxu0
      %v1077 = vadd.f32 %v560, %v1076
      %v1078 = vpop.f32.mrb[0].mxu0
      %1079 = vmatprep.mubr.bf16.mxu0 %v756
      %1080 = vmatmul.mubr.bf16.gmra.mrb[0].mxu0 %v755
      %v1081 = vpop.f32.mrb[0].mxu0
      %v1082 = vadd.f32 %v560, %v1081
      %v1083 = vpop.f32.mrb[0].mxu0
      %v1084 = vpop.f32.mrb[0].mxu0
      %v1085 = vadd.f32 %v560, %v1084
      %v1086 = vpop.f32.mrb[0].mxu0
      %1087 = vmatprep.mubr.bf16.mxu0 %v759
      %1088 = vmatmul.mubr.bf16.gmra.mrb[0].mxu0 %v758
      %v1089 = vpop.f32.mrb[0].mxu0
      %v1090 = vadd.f32 %v560, %v1089
      %v1091 = vpop.f32.mrb[0].mxu0
      %v1092 = vpop.f32.mrb[0].mxu0
      %v1093 = vadd.f32 %v560, %v1092
      %v1094 = vpop.f32.mrb[0].mxu0
      %1095 = vmatprep.mubr.bf16.mxu0 %v762
      %1096 = vmatmul.mubr.bf16.gmra.mrb[0].mxu0 %v761
      %v1097 = vpop.f32.mrb[0].mxu0
      %v1098 = vadd.f32 %v560, %v1097
      %v1099 = vpop.f32.mrb[0].mxu0
      %v1100 = vpop.f32.mrb[0].mxu0
      %v1101 = vadd.f32 %v560, %v1100
      %v1102 = vpop.f32.mrb[0].mxu0
      %1103 = vmatprep.mubr.bf16.mxu0 %v765
      %1104 = vmatmul.mubr.bf16.gmra.mrb[0].mxu0 %v764
      %v1105 = vpop.f32.mrb[0].mxu0
      %v1106 = vadd.f32 %v560, %v1105
      %v1107 = vpop.f32.mrb[0].mxu0
      %v1108 = vpop.f32.mrb[0].mxu0
      %v1109 = vadd.f32 %v560, %v1108
      %v1110 = vpop.f32.mrb[0].mxu0
      %1111 = vmatprep.mubr.bf16.mxu0 %v768
      %1112 = vmatmul.mubr.bf16.gmra.mrb[0].mxu0 %v767
      %v1113 = vpop.f32.mrb[0].mxu0
      %v1114 = vadd.f32 %v560, %v1113
      %v1115 = vpop.f32.mrb[0].mxu0
      %v1116 = vpop.f32.mrb[0].mxu0
      %v1117 = vadd.f32 %v560, %v1116
      %v1118 = vpop.f32.mrb[0].mxu0
      %1119 = vdwg.mxu0
      %1120 = vmatprep.subr.bf16.mxu0 0
      %1121 = vmatpush1.bf16.msra.mxu0 %v890
      %1122 = vmatprep.subr.bf16.mxu0 0
      %1123 = vmatpush1.bf16.msra.mxu0 %v891
      %1124 = vmatprep.subr.bf16.mxu0 0
      %1125 = vmatpush1.bf16.msra.mxu0 0
      %1126 = vmatprep.subr.bf16.mxu0 0
      %1127 = vmatpush1.bf16.msra.mxu0 0
      %1128 = vmatprep.subr.bf16.mxu0 0
      %1129 = vmatpush1.bf16.msra.mxu0 0
      %1130 = vmatprep.subr.bf16.mxu0 0
      %1131 = vmatpush1.bf16.msra.mxu0 0
      %1132 = vmatprep.subr.bf16.mxu0 0
      %1133 = vmatpush1.bf16.msra.mxu0 0
      %1134 = vmatprep.subr.bf16.mxu0 0
      %1135 = vmatpush1.bf16.msra.mxu0 0
      %1136 = vmatprep.subr.bf16.mxu0 0
      %1137 = vmatpush1.bf16.msra.mxu0 0
      %1138 = vmatprep.subr.bf16.mxu0 0
      %1139 = vmatpush1.bf16.msra.mxu0 0
      %1140 = vmatprep.subr.bf16.mxu0 0
      %1141 = vmatpush1.bf16.msra.mxu0 0
      %1142 = vmatprep.subr.bf16.mxu0 0
      %1143 = vmatpush1.bf16.msra.mxu0 0
      %1144 = vmatprep.subr.bf16.mxu0 0
      %1145 = vmatpush1.bf16.msra.mxu0 0
      %1146 = vmatprep.subr.bf16.mxu0 0
      %1147 = vmatpush1.bf16.msra.mxu0 0
      %1148 = vmatprep.subr.bf16.mxu0 0
      %1149 = vmatpush1.bf16.msra.mxu0 0
      %1150 = vmatprep.subr.bf16.mxu0 0
      %1151 = vmatpush1.bf16.msra.mxu0 0
      %1152 = vmatprep.mubr.bf16.mxu0 0
      %1153 = vmatmul.mubr.bf16.gmra.mrb[0].mxu0 %v912
      %v1154 = vpop.f32.mrb[0].mxu0
      %v1155 = vadd.f32 %v994, %v1154
      %v1156 = vpop.f32.mrb[0].mxu0
      %v1157 = vpop.f32.mrb[0].mxu0
      %v1158 = vadd.f32 %v997, %v1157
      %v1159 = vpop.f32.mrb[0].mxu0
      %1160 = vmatprep.mubr.bf16.mxu0 0
      %1161 = vmatmul.mubr.bf16.gmra.mrb[0].mxu0 %v915
      %v1162 = vpop.f32.mrb[0].mxu0
      %v1163 = vadd.f32 %v1002, %v1162
      %v1164 = vpop.f32.mrb[0].mxu0
      %v1165 = vpop.f32.mrb[0].mxu0
      %v1166 = vadd.f32 %v1005, %v1165
      %v1167 = vpop.f32.mrb[0].mxu0
      %1168 = vmatprep.mubr.bf16.mxu0 0
      %1169 = vmatmul.mubr.bf16.gmra.mrb[0].mxu0 %v918
      %v1170 = vpop.f32.mrb[0].mxu0
      %v1171 = vadd.f32 %v1010, %v1170
      %v1172 = vpop.f32.mrb[0].mxu0
      %v1173 = vpop.f32.mrb[0].mxu0
      %v1174 = vadd.f32 %v1013, %v1173
      %v1175 = vpop.f32.mrb[0].mxu0
      %1176 = vmatprep.mubr.bf16.mxu0 0
      %1177 = vmatmul.mubr.bf16.gmra.mrb[0].mxu0 %v921
      %v1178 = vpop.f32.mrb[0].mxu0
      %v1179 = vadd.f32 %v1018, %v1178
      %v1180 = vpop.f32.mrb[0].mxu0
      %v1181 = vpop.f32.mrb[0].mxu0
      %v1182 = vadd.f32 %v1021, %v1181
      %v1183 = vpop.f32.mrb[0].mxu0
      %1184 = vmatprep.mubr.bf16.mxu0 0
      %1185 = vmatmul.mubr.bf16.gmra.mrb[0].mxu0 %v924
      %v1186 = vpop.f32.mrb[0].mxu0
      %v1187 = vadd.f32 %v1026, %v1186
      %v1188 = vpop.f32.mrb[0].mxu0
      %v1189 = vpop.f32.mrb[0].mxu0
      %v1190 = vadd.f32 %v1029, %v1189
      %v1191 = vpop.f32.mrb[0].mxu0
      %1192 = vmatprep.mubr.bf16.mxu0 0
      %1193 = vmatmul.mubr.bf16.gmra.mrb[0].mxu0 %v927
      %v1194 = vpop.f32.mrb[0].mxu0
      %v1195 = vadd.f32 %v1034, %v1194
      %v1196 = vpop.f32.mrb[0].mxu0
      %v1197 = vpop.f32.mrb[0].mxu0
      %v1198 = vadd.f32 %v1037, %v1197
      %v1199 = vpop.f32.mrb[0].mxu0
      %1200 = vmatprep.mubr.bf16.mxu0 0
      %1201 = vmatmul.mubr.bf16.gmra.mrb[0].mxu0 %v930
      %v1202 = vpop.f32.mrb[0].mxu0
      %v1203 = vadd.f32 %v1042, %v1202
      %v1204 = vpop.f32.mrb[0].mxu0
      %v1205 = vpop.f32.mrb[0].mxu0
      %v1206 = vadd.f32 %v1045, %v1205
      %v1207 = vpop.f32.mrb[0].mxu0
      %1208 = vmatprep.mubr.bf16.mxu0 0
      %1209 = vmatmul.mubr.bf16.gmra.mrb[0].mxu0 %v933
      %v1210 = vpop.f32.mrb[0].mxu0
      %v1211 = vadd.f32 %v1050, %v1210
      %v1212 = vpop.f32.mrb[0].mxu0
      %v1213 = vpop.f32.mrb[0].mxu0
      %v1214 = vadd.f32 %v1053, %v1213
      %v1215 = vpop.f32.mrb[0].mxu0
      %1216 = vmatprep.mubr.bf16.mxu0 0
      %1217 = vmatmul.mubr.bf16.gmra.mrb[0].mxu0 %v936
      %v1218 = vpop.f32.mrb[0].mxu0
      %v1219 = vadd.f32 %v1058, %v1218
      %v1220 = vpop.f32.mrb[0].mxu0
      %v1221 = vpop.f32.mrb[0].mxu0
      %v1222 = vadd.f32 %v1061, %v1221
      %v1223 = vpop.f32.mrb[0].mxu0
      %1224 = vmatprep.mubr.bf16.mxu0 0
      %1225 = vmatmul.mubr.bf16.gmra.mrb[0].mxu0 %v939
      %v1226 = vpop.f32.mrb[0].mxu0
      %v1227 = vadd.f32 %v1066, %v1226
      %v1228 = vpop.f32.mrb[0].mxu0
      %v1229 = vpop.f32.mrb[0].mxu0
      %v1230 = vadd.f32 %v1069, %v1229
      %v1231 = vpop.f32.mrb[0].mxu0
      %1232 = vmatprep.mubr.bf16.mxu0 0
      %1233 = vmatmul.mubr.bf16.gmra.mrb[0].mxu0 %v942
      %v1234 = vpop.f32.mrb[0].mxu0
      %v1235 = vadd.f32 %v1074, %v1234
      %v1236 = vpop.f32.mrb[0].mxu0
      %v1237 = vpop.f32.mrb[0].mxu0
      %v1238 = vadd.f32 %v1077, %v1237
      %v1239 = vpop.f32.mrb[0].mxu0
      %1240 = vmatprep.mubr.bf16.mxu0 0
      %1241 = vmatmul.mubr.bf16.gmra.mrb[0].mxu0 %v945
      %v1242 = vpop.f32.mrb[0].mxu0
      %v1243 = vadd.f32 %v1082, %v1242
      %v1244 = vpop.f32.mrb[0].mxu0
      %v1245 = vpop.f32.mrb[0].mxu0
      %v1246 = vadd.f32 %v1085, %v1245
      %v1247 = vpop.f32.mrb[0].mxu0
      %1248 = vmatprep.mubr.bf16.mxu0 0
      %1249 = vmatmul.mubr.bf16.gmra.mrb[0].mxu0 %v948
      %v1250 = vpop.f32.mrb[0].mxu0
      %v1251 = vadd.f32 %v1090, %v1250
      %v1252 = vpop.f32.mrb[0].mxu0
      %v1253 = vpop.f32.mrb[0].mxu0
      %v1254 = vadd.f32 %v1093, %v1253
      %v1255 = vpop.f32.mrb[0].mxu0
      %1256 = vmatprep.mubr.bf16.mxu0 0
      %1257 = vmatmul.mubr.bf16.gmra.mrb[0].mxu0 %v951
      %v1258 = vpop.f32.mrb[0].mxu0
      %v1259 = vadd.f32 %v1098, %v1258
      %v1260 = vpop.f32.mrb[0].mxu0
      %v1261 = vpop.f32.mrb[0].mxu0
      %v1262 = vadd.f32 %v1101, %v1261
      %v1263 = vpop.f32.mrb[0].mxu0
      %1264 = vmatprep.mubr.bf16.mxu0 0
      %1265 = vmatmul.mubr.bf16.gmra.mrb[0].mxu0 %v954
      %v1266 = vpop.f32.mrb[0].mxu0
      %v1267 = vadd.f32 %v1106, %v1266
      %v1268 = vpop.f32.mrb[0].mxu0
      %v1269 = vpop.f32.mrb[0].mxu0
      %v1270 = vadd.f32 %v1109, %v1269
      %v1271 = vpop.f32.mrb[0].mxu0
      %1272 = vmatprep.mubr.bf16.mxu0 0
      %1273 = vmatmul.mubr.bf16.gmra.mrb[0].mxu0 %v957
      %v1274 = vpop.f32.mrb[0].mxu0
      %v1275 = vadd.f32 %v1114, %v1274
      %v1276 = vpop.f32.mrb[0].mxu0
      %v1277 = vpop.f32.mrb[0].mxu0
      %v1278 = vadd.f32 %v1117, %v1277
      %v1279 = vpop.f32.mrb[0].mxu0
      %1280 = vdwg.mxu0
      %1281 = vst [vmem:[%s453] sm:$0xff] %v1155
      %1282 = vst [vmem:[%s453 + $0x8] sm:$0xff] %v1158
      %1283 = vst [vmem:[%s453 + $0x10] sm:$0xff] %v1163
      %1284 = vst [vmem:[%s453 + $0x18] sm:$0xff] %v1166
      %1285 = vst [vmem:[%s453 + $0x20] sm:$0xff] %v1171
      %1286 = vst [vmem:[%s453 + $0x28] sm:$0xff] %v1174
      %1287 = vst [vmem:[%s453 + $0x30] sm:$0xff] %v1179
      %1288 = vst [vmem:[%s453 + $0x38] sm:$0xff] %v1182
      %1289 = vst [vmem:[%s453 + $0x40] sm:$0xff] %v1187
      %1290 = vst [vmem:[%s453 + $0x48] sm:$0xff] %v1190
      %1291 = vst [vmem:[%s453 + $0x50] sm:$0xff] %v1195
      %1292 = vst [vmem:[%s453 + $0x58] sm:$0xff] %v1198
      %1293 = vst [vmem:[%s453 + $0x60] sm:$0xff] %v1203
      %1294 = vst [vmem:[%s453 + $0x68] sm:$0xff] %v1206
      %1295 = vst [vmem:[%s453 + $0x70] sm:$0xff] %v1211
      %1296 = vst [vmem:[%s453 + $0x78] sm:$0xff] %v1214
      %1297 = vst [vmem:[%s453 + $0x80] sm:$0xff] %v1219
      %1298 = vst [vmem:[%s453 + $0x88] sm:$0xff] %v1222
      %1299 = vst [vmem:[%s453 + $0x90] sm:$0xff] %v1227
      %1300 = vst [vmem:[%s453 + $0x98] sm:$0xff] %v1230
      %1301 = vst [vmem:[%s453 + $0xa0] sm:$0xff] %v1235
      %1302 = vst [vmem:[%s453 + $0xa8] sm:$0xff] %v1238
      %1303 = vst [vmem:[%s453 + $0xb0] sm:$0xff] %v1243
      %1304 = vst [vmem:[%s453 + $0xb8] sm:$0xff] %v1246
      %1305 = vst [vmem:[%s453 + $0xc0] sm:$0xff] %v1251
      %1306 = vst [vmem:[%s453 + $0xc8] sm:$0xff] %v1254
      %1307 = vst [vmem:[%s453 + $0xd0] sm:$0xff] %v1259
      %1308 = vst [vmem:[%s453 + $0xd8] sm:$0xff] %v1262
      %1309 = vst [vmem:[%s453 + $0xe0] sm:$0xff] %v1267
      %1310 = vst [vmem:[%s453 + $0xe8] sm:$0xff] %v1270
      %1311 = vst [vmem:[%s453 + $0xf0] sm:$0xff] %v1275
      %1312 = vst [vmem:[%s453 + $0xf8] sm:$0xff] %v1278
      %v1313 = vld [vmem:[%s430] sm:$0xf]
      %v1314 = vld [vmem:[%s430 + $0x4] sm:$0xf]
      %v1315 = vld [vmem:[%s7] sm:$0xf]
      %v1316 = vld [vmem:[%s7 + $0x4] sm:$0xf]
      %v1317 = vld [vmem:[%s7 + $0x8] sm:$0xf]
      %v1318 = vld [vmem:[%s7 + $0xc] sm:$0xf]
      %v1319 = vld [vmem:[%s7 + $0x10] sm:$0xf]
      %v1320 = vld [vmem:[%s7 + $0x14] sm:$0xf]
      %v1321 = vld [vmem:[%s7 + $0x18] sm:$0xf]
      %v1322 = vld [vmem:[%s7 + $0x1c] sm:$0xf]
      %v1323 = vld [vmem:[%s7 + $0x20] sm:$0xf]
      %v1324 = vld [vmem:[%s7 + $0x24] sm:$0xf]
      %v1325 = vld [vmem:[%s7 + $0x28] sm:$0xf]
      %v1326 = vld [vmem:[%s7 + $0x2c] sm:$0xf]
      %v1329 = vunpack.c.l.b16 %v1313
      %v1330 = vunpack.c.l.b16 %v1314
      %v1331 = vpack.c.b16 %v1330, %v1329
      %v1344 = vunpack.c.l.b16 %v1315
      %v1345 = vunpack.c.l.b16 %v1316
      %v1346 = vunpack.c.l.b16 %v1317
      %v1347 = vunpack.c.l.b16 %v1318
      %v1348 = vunpack.c.l.b16 %v1319
      %v1349 = vunpack.c.l.b16 %v1320
      %v1350 = vunpack.c.l.b16 %v1321
      %v1351 = vunpack.c.l.b16 %v1322
      %v1352 = vunpack.c.l.b16 %v1323
      %v1353 = vunpack.c.l.b16 %v1324
      %v1354 = vunpack.c.l.b16 %v1325
      %v1355 = vunpack.c.l.b16 %v1326
      %v1356 = vpack.c.b16 %v1345, %v1344
      %v1357 = vpack.c.b16 %v1347, %v1346
      %v1358 = vpack.c.b16 %v1349, %v1348
      %v1359 = vpack.c.b16 %v1351, %v1350
      %v1360 = vpack.c.b16 %v1353, %v1352
      %v1361 = vpack.c.b16 %v1355, %v1354
      %vm1368 = vcmask 785408
      %v1370 = vsel %vm1368, %v1331, 0
      %1372 = vmatprep.subr.bf16.mxu0 0
      %1373 = vmatpush1.bf16.msra.mxu0 %v1356
      %1374 = vmatprep.subr.bf16.mxu0 0
      %1375 = vmatpush1.bf16.msra.mxu0 %v1357
      %1376 = vmatprep.subr.bf16.mxu0 0
      %1377 = vmatpush1.bf16.msra.mxu0 %v1358
      %1378 = vmatprep.subr.bf16.mxu0 0
      %1379 = vmatpush1.bf16.msra.mxu0 %v1359
      %1380 = vmatprep.subr.bf16.mxu0 0
      %1381 = vmatpush1.bf16.msra.mxu0 %v1360
      %1382 = vmatprep.subr.bf16.mxu0 0
      %1383 = vmatpush1.bf16.msra.mxu0 %v1361
      %1384 = vmatprep.subr.bf16.mxu0 0
      %1385 = vmatpush1.bf16.msra.mxu0 0
      %1386 = vmatprep.subr.bf16.mxu0 0
      %1387 = vmatpush1.bf16.msra.mxu0 0
      %1388 = vmatprep.subr.bf16.mxu0 0
      %1389 = vmatpush1.bf16.msra.mxu0 0
      %1390 = vmatprep.subr.bf16.mxu0 0
      %1391 = vmatpush1.bf16.msra.mxu0 0
      %1392 = vmatprep.subr.bf16.mxu0 0
      %1393 = vmatpush1.bf16.msra.mxu0 0
      %1394 = vmatprep.subr.bf16.mxu0 0
      %1395 = vmatpush1.bf16.msra.mxu0 0
      %1396 = vmatprep.subr.bf16.mxu0 0
      %1397 = vmatpush1.bf16.msra.mxu0 0
      %1398 = vmatprep.subr.bf16.mxu0 0
      %1399 = vmatpush1.bf16.msra.mxu0 0
      %1400 = vmatprep.subr.bf16.mxu0 0
      %1401 = vmatpush1.bf16.msra.mxu0 0
      %1402 = vmatprep.subr.bf16.mxu0 0
      %1403 = vmatpush1.bf16.msra.mxu0 0
      %1404 = vmatprep.mubr.bf16.mxu0 0
      %1405 = vmatmul.mubr.bf16.gmra.mrb[0].mxu0 %v1370
      %v1406 = vpop.f32.mrb[0].mxu0
      %v1407 = vadd.f32 0.0, %v1406
      %v1408 = vpop.f32.mrb[0].mxu0
      %v1409 = vpop.f32.mrb[0].mxu0
      %v1410 = vadd.f32 0.0, %v1409
      %v1411 = vpop.f32.mrb[0].mxu0
      %1412 = vdwg.mxu0
      %v1413 = vld [vmem:[%s435] sm:$0xf]
      %v1414 = vld [vmem:[%s435 + $0x4] sm:$0xf]
      %s1415 = scalar_lea.vmem %s7, 48
      %v1416 = vld [vmem:[%s1415] sm:$0xf]
      %v1417 = vld [vmem:[%s1415 + $0x4] sm:$0xf]
      %v1418 = vld [vmem:[%s1415 + $0x8] sm:$0xf]
      %v1419 = vld [vmem:[%s1415 + $0xc] sm:$0xf]
      %v1420 = vld [vmem:[%s1415 + $0x10] sm:$0xf]
      %v1421 = vld [vmem:[%s1415 + $0x14] sm:$0xf]
      %v1422 = vld [vmem:[%s1415 + $0x18] sm:$0xf]
      %v1423 = vld [vmem:[%s1415 + $0x1c] sm:$0xf]
      %v1424 = vld [vmem:[%s1415 + $0x20] sm:$0xf]
      %v1425 = vld [vmem:[%s1415 + $0x24] sm:$0xf]
      %v1426 = vld [vmem:[%s1415 + $0x28] sm:$0xf]
      %v1427 = vld [vmem:[%s1415 + $0x2c] sm:$0xf]
      %v1430 = vunpack.c.l.b16 %v1413
      %v1431 = vunpack.c.l.b16 %v1414
      %v1432 = vpack.c.b16 %v1431, %v1430
      %v1445 = vunpack.c.l.b16 %v1416
      %v1446 = vunpack.c.l.b16 %v1417
      %v1447 = vunpack.c.l.b16 %v1418
      %v1448 = vunpack.c.l.b16 %v1419
      %v1449 = vunpack.c.l.b16 %v1420
      %v1450 = vunpack.c.l.b16 %v1421
      %v1451 = vunpack.c.l.b16 %v1422
      %v1452 = vunpack.c.l.b16 %v1423
      %v1453 = vunpack.c.l.b16 %v1424
      %v1454 = vunpack.c.l.b16 %v1425
      %v1455 = vunpack.c.l.b16 %v1426
      %v1456 = vunpack.c.l.b16 %v1427
      %v1457 = vpack.c.b16 %v1446, %v1445
      %v1458 = vpack.c.b16 %v1448, %v1447
      %v1459 = vpack.c.b16 %v1450, %v1449
      %v1460 = vpack.c.b16 %v1452, %v1451
      %v1461 = vpack.c.b16 %v1454, %v1453
      %v1462 = vpack.c.b16 %v1456, %v1455
      %v1470 = vsel %vm1368, %v1432, 0
      %1472 = vmatprep.subr.bf16.mxu0 0
      %1473 = vmatpush1.bf16.msra.mxu0 %v1457
      %1474 = vmatprep.subr.bf16.mxu0 0
      %1475 = vmatpush1.bf16.msra.mxu0 %v1458
      %1476 = vmatprep.subr.bf16.mxu0 0
      %1477 = vmatpush1.bf16.msra.mxu0 %v1459
      %1478 = vmatprep.subr.bf16.mxu0 0
      %1479 = vmatpush1.bf16.msra.mxu0 %v1460
      %1480 = vmatprep.subr.bf16.mxu0 0
      %1481 = vmatpush1.bf16.msra.mxu0 %v1461
      %1482 = vmatprep.subr.bf16.mxu0 0
      %1483 = vmatpush1.bf16.msra.mxu0 %v1462
      %1484 = vmatprep.subr.bf16.mxu0 0
      %1485 = vmatpush1.bf16.msra.mxu0 0
      %1486 = vmatprep.subr.bf16.mxu0 0
      %1487 = vmatpush1.bf16.msra.mxu0 0
      %1488 = vmatprep.subr.bf16.mxu0 0
      %1489 = vmatpush1.bf16.msra.mxu0 0
      %1490 = vmatprep.subr.bf16.mxu0 0
      %1491 = vmatpush1.bf16.msra.mxu0 0
      %1492 = vmatprep.subr.bf16.mxu0 0
      %1493 = vmatpush1.bf16.msra.mxu0 0
      %1494 = vmatprep.subr.bf16.mxu0 0
      %1495 = vmatpush1.bf16.msra.mxu0 0
      %1496 = vmatprep.subr.bf16.mxu0 0
      %1497 = vmatpush1.bf16.msra.mxu0 0
      %1498 = vmatprep.subr.bf16.mxu0 0
      %1499 = vmatpush1.bf16.msra.mxu0 0
      %1500 = vmatprep.subr.bf16.mxu0 0
      %1501 = vmatpush1.bf16.msra.mxu0 0
      %1502 = vmatprep.subr.bf16.mxu0 0
      %1503 = vmatpush1.bf16.msra.mxu0 0
      %1504 = vmatprep.mubr.bf16.mxu0 0
      %1505 = vmatmul.mubr.bf16.gmra.mrb[0].mxu0 %v1470
      %v1506 = vpop.f32.mrb[0].mxu0
      %v1507 = vadd.f32 0.0, %v1506
      %v1508 = vpop.f32.mrb[0].mxu0
      %v1509 = vpop.f32.mrb[0].mxu0
      %v1510 = vadd.f32 0.0, %v1509
      %v1511 = vpop.f32.mrb[0].mxu0
      %1512 = vdwg.mxu0
      %v1513 = vld [vmem:[%s440] sm:$0xf]
      %v1514 = vld [vmem:[%s440 + $0x4] sm:$0xf]
      %s1515 = scalar_lea.vmem %s7, 96
      %v1516 = vld [vmem:[%s1515] sm:$0xf]
      %v1517 = vld [vmem:[%s1515 + $0x4] sm:$0xf]
      %v1518 = vld [vmem:[%s1515 + $0x8] sm:$0xf]
      %v1519 = vld [vmem:[%s1515 + $0xc] sm:$0xf]
      %v1520 = vld [vmem:[%s1515 + $0x10] sm:$0xf]
      %v1521 = vld [vmem:[%s1515 + $0x14] sm:$0xf]
      %v1522 = vld [vmem:[%s1515 + $0x18] sm:$0xf]
      %v1523 = vld [vmem:[%s1515 + $0x1c] sm:$0xf]
      %v1524 = vld [vmem:[%s1515 + $0x20] sm:$0xf]
      %v1525 = vld [vmem:[%s1515 + $0x24] sm:$0xf]
      %v1526 = vld [vmem:[%s1515 + $0x28] sm:$0xf]
      %v1527 = vld [vmem:[%s1515 + $0x2c] sm:$0xf]
      %v1530 = vunpack.c.l.b16 %v1513
      %v1531 = vunpack.c.l.b16 %v1514
      %v1532 = vpack.c.b16 %v1531, %v1530
      %v1545 = vunpack.c.l.b16 %v1516
      %v1546 = vunpack.c.l.b16 %v1517
      %v1547 = vunpack.c.l.b16 %v1518
      %v1548 = vunpack.c.l.b16 %v1519
      %v1549 = vunpack.c.l.b16 %v1520
      %v1550 = vunpack.c.l.b16 %v1521
      %v1551 = vunpack.c.l.b16 %v1522
      %v1552 = vunpack.c.l.b16 %v1523
      %v1553 = vunpack.c.l.b16 %v1524
      %v1554 = vunpack.c.l.b16 %v1525
      %v1555 = vunpack.c.l.b16 %v1526
      %v1556 = vunpack.c.l.b16 %v1527
      %v1557 = vpack.c.b16 %v1546, %v1545
      %v1558 = vpack.c.b16 %v1548, %v1547
      %v1559 = vpack.c.b16 %v1550, %v1549
      %v1560 = vpack.c.b16 %v1552, %v1551
      %v1561 = vpack.c.b16 %v1554, %v1553
      %v1562 = vpack.c.b16 %v1556, %v1555
      %v1570 = vsel %vm1368, %v1532, 0
      %1572 = vmatprep.subr.bf16.mxu0 0
      %1573 = vmatpush1.bf16.msra.mxu0 %v1557
      %1574 = vmatprep.subr.bf16.mxu0 0
      %1575 = vmatpush1.bf16.msra.mxu0 %v1558
      %1576 = vmatprep.subr.bf16.mxu0 0
      %1577 = vmatpush1.bf16.msra.mxu0 %v1559
      %1578 = vmatprep.subr.bf16.mxu0 0
      %1579 = vmatpush1.bf16.msra.mxu0 %v1560
      %1580 = vmatprep.subr.bf16.mxu0 0
      %1581 = vmatpush1.bf16.msra.mxu0 %v1561
      %1582 = vmatprep.subr.bf16.mxu0 0
      %1583 = vmatpush1.bf16.msra.mxu0 %v1562
      %1584 = vmatprep.subr.bf16.mxu0 0
      %1585 = vmatpush1.bf16.msra.mxu0 0
      %1586 = vmatprep.subr.bf16.mxu0 0
      %1587 = vmatpush1.bf16.msra.mxu0 0
      %1588 = vmatprep.subr.bf16.mxu0 0
      %1589 = vmatpush1.bf16.msra.mxu0 0
      %1590 = vmatprep.subr.bf16.mxu0 0
      %1591 = vmatpush1.bf16.msra.mxu0 0
      %1592 = vmatprep.subr.bf16.mxu0 0
      %1593 = vmatpush1.bf16.msra.mxu0 0
      %1594 = vmatprep.subr.bf16.mxu0 0
      %1595 = vmatpush1.bf16.msra.mxu0 0
      %1596 = vmatprep.subr.bf16.mxu0 0
      %1597 = vmatpush1.bf16.msra.mxu0 0
      %1598 = vmatprep.subr.bf16.mxu0 0
      %1599 = vmatpush1.bf16.msra.mxu0 0
      %1600 = vmatprep.subr.bf16.mxu0 0
      %1601 = vmatpush1.bf16.msra.mxu0 0
      %1602 = vmatprep.subr.bf16.mxu0 0
      %1603 = vmatpush1.bf16.msra.mxu0 0
      %1604 = vmatprep.mubr.bf16.mxu0 0
      %1605 = vmatmul.mubr.bf16.gmra.mrb[0].mxu0 %v1570
      %v1606 = vpop.f32.mrb[0].mxu0
      %v1607 = vadd.f32 0.0, %v1606
      %v1608 = vpop.f32.mrb[0].mxu0
      %v1609 = vpop.f32.mrb[0].mxu0
      %v1610 = vadd.f32 0.0, %v1609
      %v1611 = vpop.f32.mrb[0].mxu0
      %1612 = vdwg.mxu0
      %v1613 = vld [vmem:[%s445] sm:$0xf]
      %v1614 = vld [vmem:[%s445 + $0x4] sm:$0xf]
      %s1615 = scalar_lea.vmem %s7, 144
      %v1616 = vld [vmem:[%s1615] sm:$0xf]
      %v1617 = vld [vmem:[%s1615 + $0x4] sm:$0xf]
      %v1618 = vld [vmem:[%s1615 + $0x8] sm:$0xf]
      %v1619 = vld [vmem:[%s1615 + $0xc] sm:$0xf]
      %v1620 = vld [vmem:[%s1615 + $0x10] sm:$0xf]
      %v1621 = vld [vmem:[%s1615 + $0x14] sm:$0xf]
      %v1622 = vld [vmem:[%s1615 + $0x18] sm:$0xf]
      %v1623 = vld [vmem:[%s1615 + $0x1c] sm:$0xf]
      %v1624 = vld [vmem:[%s1615 + $0x20] sm:$0xf]
      %v1625 = vld [vmem:[%s1615 + $0x24] sm:$0xf]
      %v1626 = vld [vmem:[%s1615 + $0x28] sm:$0xf]
      %v1627 = vld [vmem:[%s1615 + $0x2c] sm:$0xf]
      %v1630 = vunpack.c.l.b16 %v1613
      %v1631 = vunpack.c.l.b16 %v1614
      %v1632 = vpack.c.b16 %v1631, %v1630
      %v1645 = vunpack.c.l.b16 %v1616
      %v1646 = vunpack.c.l.b16 %v1617
      %v1647 = vunpack.c.l.b16 %v1618
      %v1648 = vunpack.c.l.b16 %v1619
      %v1649 = vunpack.c.l.b16 %v1620
      %v1650 = vunpack.c.l.b16 %v1621
      %v1651 = vunpack.c.l.b16 %v1622
      %v1652 = vunpack.c.l.b16 %v1623
      %v1653 = vunpack.c.l.b16 %v1624
      %v1654 = vunpack.c.l.b16 %v1625
      %v1655 = vunpack.c.l.b16 %v1626
      %v1656 = vunpack.c.l.b16 %v1627
      %v1657 = vpack.c.b16 %v1646, %v1645
      %v1658 = vpack.c.b16 %v1648, %v1647
      %v1659 = vpack.c.b16 %v1650, %v1649
      %v1660 = vpack.c.b16 %v1652, %v1651
      %v1661 = vpack.c.b16 %v1654, %v1653
      %v1662 = vpack.c.b16 %v1656, %v1655
      %v1670 = vsel %vm1368, %v1632, 0
      %1672 = vmatprep.subr.bf16.mxu0 0
      %1673 = vmatpush1.bf16.msra.mxu0 %v1657
      %1674 = vmatprep.subr.bf16.mxu0 0
      %1675 = vmatpush1.bf16.msra.mxu0 %v1658
      %1676 = vmatprep.subr.bf16.mxu0 0
      %1677 = vmatpush1.bf16.msra.mxu0 %v1659
      %1678 = vmatprep.subr.bf16.mxu0 0
      %1679 = vmatpush1.bf16.msra.mxu0 %v1660
      %1680 = vmatprep.subr.bf16.mxu0 0
      %1681 = vmatpush1.bf16.msra.mxu0 %v1661
      %1682 = vmatprep.subr.bf16.mxu0 0
      %1683 = vmatpush1.bf16.msra.mxu0 %v1662
      %1684 = vmatprep.subr.bf16.mxu0 0
      %1685 = vmatpush1.bf16.msra.mxu0 0
      %1686 = vmatprep.subr.bf16.mxu0 0
      %1687 = vmatpush1.bf16.msra.mxu0 0
      %1688 = vmatprep.subr.bf16.mxu0 0
      %1689 = vmatpush1.bf16.msra.mxu0 0
      %1690 = vmatprep.subr.bf16.mxu0 0
      %1691 = vmatpush1.bf16.msra.mxu0 0
      %1692 = vmatprep.subr.bf16.mxu0 0
      %1693 = vmatpush1.bf16.msra.mxu0 0
      %1694 = vmatprep.subr.bf16.mxu0 0
      %1695 = vmatpush1.bf16.msra.mxu0 0
      %1696 = vmatprep.subr.bf16.mxu0 0
      %1697 = vmatpush1.bf16.msra.mxu0 0
      %1698 = vmatprep.subr.bf16.mxu0 0
      %1699 = vmatpush1.bf16.msra.mxu0 0
      %1700 = vmatprep.subr.bf16.mxu0 0
      %1701 = vmatpush1.bf16.msra.mxu0 0
      %1702 = vmatprep.subr.bf16.mxu0 0
      %1703 = vmatpush1.bf16.msra.mxu0 0
      %1704 = vmatprep.mubr.bf16.mxu0 0
      %1705 = vmatmul.mubr.bf16.gmra.mrb[0].mxu0 %v1670
      %v1706 = vpop.f32.mrb[0].mxu0
      %v1707 = vadd.f32 0.0, %v1706
      %v1708 = vpop.f32.mrb[0].mxu0
      %v1709 = vpop.f32.mrb[0].mxu0
      %v1710 = vadd.f32 0.0, %v1709
      %v1711 = vpop.f32.mrb[0].mxu0
      %1712 = vdwg.mxu0
      %v1713 = vld [vmem:[%s448] sm:$0x1]
      %v1714 = vld [vmem:[%s8] sm:$0xf]
      %v1715 = vld [vmem:[%s8 + $0x4] sm:$0xf]
      %v1716 = vld [vmem:[%s8 + $0x8] sm:$0xf]
      %v1717 = vld [vmem:[%s8 + $0xc] sm:$0xf]
      %v1718 = vld [vmem:[%s8 + $0x10] sm:$0xf]
      %v1719 = vld [vmem:[%s8 + $0x14] sm:$0xf]
      %v1720 = vld [vmem:[%s8 + $0x18] sm:$0xf]
      %v1721 = vld [vmem:[%s8 + $0x1c] sm:$0xf]
      %v1722 = vld [vmem:[%s8 + $0x20] sm:$0xf]
      %v1723 = vld [vmem:[%s8 + $0x24] sm:$0xf]
      %v1724 = vld [vmem:[%s8 + $0x28] sm:$0xf]
      %v1725 = vld [vmem:[%s8 + $0x2c] sm:$0xf]
      %v1726 = vld [vmem:[%s8 + $0x30] sm:$0xf]
      %v1727 = vld [vmem:[%s8 + $0x34] sm:$0xf]
      %v1728 = vld [vmem:[%s8 + $0x38] sm:$0xf]
      %v1729 = vld [vmem:[%s8 + $0x3c] sm:$0xf]
      %v1746 = vunpack.c.l.b16 %v1714
      %v1747 = vunpack.c.l.b16 %v1715
      %v1748 = vunpack.c.l.b16 %v1716
      %v1749 = vunpack.c.l.b16 %v1717
      %v1750 = vunpack.c.l.b16 %v1718
      %v1751 = vunpack.c.l.b16 %v1719
      %v1752 = vunpack.c.l.b16 %v1720
      %v1753 = vunpack.c.l.b16 %v1721
      %v1754 = vunpack.c.l.b16 %v1722
      %v1755 = vunpack.c.l.b16 %v1723
      %v1756 = vunpack.c.l.b16 %v1724
      %v1757 = vunpack.c.l.b16 %v1725
      %v1758 = vunpack.c.l.b16 %v1726
      %v1759 = vunpack.c.l.b16 %v1727
      %v1760 = vunpack.c.l.b16 %v1728
      %v1761 = vunpack.c.l.b16 %v1729
      %v1762 = vpack.c.b16 %v1747, %v1746
      %v1763 = vpack.c.b16 %v1749, %v1748
      %v1764 = vpack.c.b16 %v1751, %v1750
      %v1765 = vpack.c.b16 %v1753, %v1752
      %v1766 = vpack.c.b16 %v1755, %v1754
      %v1767 = vpack.c.b16 %v1757, %v1756
      %v1768 = vpack.c.b16 %v1759, %v1758
      %v1769 = vpack.c.b16 %v1761, %v1760
      %1778 = vmatprep.subr.bf16.mxu0 0
      %1779 = vmatpush1.bf16.msra.mxu0 %v1762
      %1780 = vmatprep.subr.bf16.mxu0 0
      %1781 = vmatpush1.bf16.msra.mxu0 %v1763
      %1782 = vmatprep.subr.bf16.mxu0 0
      %1783 = vmatpush1.bf16.msra.mxu0 %v1764
      %1784 = vmatprep.subr.bf16.mxu0 0
      %1785 = vmatpush1.bf16.msra.mxu0 %v1765
      %1786 = vmatprep.subr.bf16.mxu0 0
      %1787 = vmatpush1.bf16.msra.mxu0 %v1766
      %1788 = vmatprep.subr.bf16.mxu0 0
      %1789 = vmatpush1.bf16.msra.mxu0 %v1767
      %1790 = vmatprep.subr.bf16.mxu0 0
      %1791 = vmatpush1.bf16.msra.mxu0 %v1768
      %1792 = vmatprep.subr.bf16.mxu0 0
      %1793 = vmatpush1.bf16.msra.mxu0 %v1769
      %1794 = vmatprep.subr.bf16.mxu0 0
      %1795 = vmatpush1.bf16.msra.mxu0 0
      %1796 = vmatprep.subr.bf16.mxu0 0
      %1797 = vmatpush1.bf16.msra.mxu0 0
      %1798 = vmatprep.subr.bf16.mxu0 0
      %1799 = vmatpush1.bf16.msra.mxu0 0
      %1800 = vmatprep.subr.bf16.mxu0 0
      %1801 = vmatpush1.bf16.msra.mxu0 0
      %1802 = vmatprep.subr.bf16.mxu0 0
      %1803 = vmatpush1.bf16.msra.mxu0 0
      %1804 = vmatprep.subr.bf16.mxu0 0
      %1805 = vmatpush1.bf16.msra.mxu0 0
      %1806 = vmatprep.subr.bf16.mxu0 0
      %1807 = vmatpush1.bf16.msra.mxu0 0
      %1808 = vmatprep.subr.bf16.mxu0 0
      %1809 = vmatpush1.bf16.msra.mxu0 0
      %1810 = vmatprep.mubr.bf16.mxu0 0
      %1811 = vmatmul.mubr.bf16.gmra.mrb[0].mxu0 %v1713
      %v1812 = vpop.f32.mrb[0].mxu0
      %v1813 = vadd.f32 0.0, %v1812
      %v1814 = vpop.f32.mrb[0].mxu0
      %v1815 = vpop.f32.mrb[0].mxu0
      %v1816 = vpop.f32.mrb[0].mxu0
      %1817 = vdwg.mxu0
      %v1818 = vlaneseq
      %v1819 = vshrl.u32 %v1818, 7
      %v1820 = vadd.s32 %v1819, 8
      %v1821 = vlaneseq
      %v1822 = vand.u32 %v1821, 127
      %vm1823 = vcmp.eq.s32.totalorder %v1819, 0
      %vm1824 = vcmp.eq.s32.totalorder %v1820, 0
      %vm1825 = vcmp.eq.s32.totalorder %v1819, 15
      %vm1826 = vcmp.eq.s32.totalorder %v1820, 15
      %vm1827 = vcmp.lt.s32.totalorder %v1822, 32
      %vm1828 = vmand %vm1823, %vm1827
      %vm1829 = vmand %vm1824, %vm1827
      %vm1830 = vcmp.ge.s32.totalorder %v1822, 32
      %vm1831 = vmand %vm1825, %vm1830
      %vm1832 = vmand %vm1826, %vm1830
      %vm1833 = vcmp.lt.s32.totalorder %v1822, 64
      %vm1834 = vmand %vm1831, %vm1833
      %vm1835 = vmand %vm1832, %vm1833
      %vm1836 = vmor %vm1828, %vm1834
      %vm1837 = vmor %vm1829, %vm1835
      %vm1838 = vcmp.ge.s32.totalorder %v1822, 64
      %vm1839 = vmand %vm1823, %vm1838
      %vm1840 = vmand %vm1824, %vm1838
      %vm1841 = vcmp.lt.s32.totalorder %v1822, 96
      %vm1842 = vmand %vm1839, %vm1841
      %vm1843 = vmand %vm1840, %vm1841
      %vm1844 = vcmp.ge.s32.totalorder %v1822, 96
      %vm1845 = vmand %vm1825, %vm1844
      %vm1846 = vmand %vm1826, %vm1844
      %vm1847 = vmor %vm1842, %vm1845
      %vm1848 = vmor %vm1843, %vm1846
      %v1849 = vlaneseq
      %v1850 = vshrl.u32 %v1849, 7
      %v1851 = vsub.s32 0, %v1850
      %v1852 = vrot.slane %v1813, %v1851
      %v1853 = vsel %vm1836, %v1852, 0.0
      %v1854 = vsel %vm1837, %v1852, 0.0
      %v1855 = vsub.f32 %v1407, %v1853
      %v1856 = vsub.f32 %v1410, %v1854
      %v1857 = vsel %vm1847, %v1852, 0.0
      %v1858 = vsel %vm1848, %v1852, 0.0
      %v1859 = vsub.f32 %v1507, %v1857
      %v1860 = vsub.f32 %v1510, %v1858
      %v1861 = vld [vmem:[%s453] sm:$0xff]
      %v1862 = vld [vmem:[%s453 + $0x8] sm:$0xff]
      %v1863 = vsub.f32 %v1861, %v1855
      %v1864 = vsub.f32 %v1862, %v1856
      %1865 = vst [vmem:[%s453] sm:$0xff] %v1863
      %1866 = vst [vmem:[%s453 + $0x8] sm:$0xff] %v1864
      %s1867 = scalar_lea.vmem %s453, 240
      %v1868 = vld [vmem:[%s1867] sm:$0xff]
      %v1869 = vld [vmem:[%s1867 + $0x8] sm:$0xff]
      %v1870 = vsub.f32 %v1868, %v1859
      %v1871 = vsub.f32 %v1869, %v1860
      %1872 = vst [vmem:[%s1867] sm:$0xff] %v1870
      %1873 = vst [vmem:[%s1867 + $0x8] sm:$0xff] %v1871
      %v1874 = vld [vmem:[%s453] sm:$0x1]
      %v1875 = vld [vmem:[%s453 + $0x10] sm:$0x1]
      %v1876 = vld [vmem:[%s453 + $0x20] sm:$0x1]
      %v1877 = vld [vmem:[%s453 + $0x30] sm:$0x1]
      %v1878 = vld [vmem:[%s453 + $0x40] sm:$0x1]
      %v1879 = vld [vmem:[%s453 + $0x50] sm:$0x1]
      %v1880 = vld [vmem:[%s453 + $0x60] sm:$0x1]
      %v1881 = vld [vmem:[%s453 + $0x70] sm:$0x1]
      %v1882 = vld [vmem:[%s453 + $0x80] sm:$0x1]
      %v1883 = vld [vmem:[%s453 + $0x90] sm:$0x1]
      %v1884 = vld [vmem:[%s453 + $0xa0] sm:$0x1]
      %v1885 = vld [vmem:[%s453 + $0xb0] sm:$0x1]
      %v1886 = vld [vmem:[%s453 + $0xc0] sm:$0x1]
      %v1887 = vld [vmem:[%s453 + $0xd0] sm:$0x1]
      %v1888 = vld [vmem:[%s453 + $0xe0] sm:$0x1]
      %v1889 = vld [vmem:[%s453 + $0xf0] sm:$0x1]
      %v1892 = vcombine.high %v1607, %v1607
      %v1894 = vunpack.c.l.s4 1966171168
      %v1895 = vunpack.c.0.s8 %v1894
      %v1896 = vlaneseq
      %v1897 = vshrl.u32 %v1896, 7
      %v1898 = vsub.s32 %v1895, %v1897
      %v1899 = vrot.slane %v1607, %v1898
      %v1901 = vunpack.c.l.s4 1966171168
      %v1902 = vunpack.c.0.s8 %v1901
      %v1903 = vlaneseq
      %v1904 = vshrl.u32 %v1903, 7
      %v1905 = vsub.s32 %v1902, %v1904
      %v1906 = vrot.slane %v1892, %v1905
      %v1907 = vcombine.high %v1899, %v1899
      %v1908 = vcombine.high %v1906, %v1906
      %v1910 = vunpack.c.l.s4 1966171168
      %v1911 = vunpack.c.0.s8 %v1910
      %v1912 = vlaneseq
      %v1913 = vshrl.u32 %v1912, 7
      %v1914 = vsub.s32 %v1911, %v1913
      %v1915 = vrot.slane %v1899, %v1914
      %v1917 = vunpack.c.l.s4 1966171168
      %v1918 = vunpack.c.0.s8 %v1917
      %v1919 = vlaneseq
      %v1920 = vshrl.u32 %v1919, 7
      %v1921 = vsub.s32 %v1918, %v1920
      %v1922 = vrot.slane %v1906, %v1921
      %v1924 = vunpack.c.l.s4 1966171168
      %v1925 = vunpack.c.0.s8 %v1924
      %v1926 = vlaneseq
      %v1927 = vshrl.u32 %v1926, 7
      %v1928 = vsub.s32 %v1925, %v1927
      %v1929 = vrot.slane %v1907, %v1928
      %v1931 = vunpack.c.l.s4 1966171168
      %v1932 = vunpack.c.0.s8 %v1931
      %v1933 = vlaneseq
      %v1934 = vshrl.u32 %v1933, 7
      %v1935 = vsub.s32 %v1932, %v1934
      %v1936 = vrot.slane %v1908, %v1935
      %v1937 = vcombine.high %v1915, %v1915
      %v1938 = vcombine.high %v1922, %v1922
      %v1939 = vcombine.high %v1929, %v1929
      %v1940 = vcombine.high %v1936, %v1936
      %v1941 = vcombine.high %v1610, %v1610
      %v1943 = vunpack.c.l.s4 1966171168
      %v1944 = vunpack.c.0.s8 %v1943
      %v1945 = vlaneseq
      %v1946 = vshrl.u32 %v1945, 7
      %v1947 = vsub.s32 %v1944, %v1946
      %v1948 = vrot.slane %v1610, %v1947
      %v1950 = vunpack.c.l.s4 1966171168
      %v1951 = vunpack.c.0.s8 %v1950
      %v1952 = vlaneseq
      %v1953 = vshrl.u32 %v1952, 7
      %v1954 = vsub.s32 %v1951, %v1953
      %v1955 = vrot.slane %v1941, %v1954
      %v1956 = vcombine.high %v1948, %v1948
      %v1957 = vcombine.high %v1955, %v1955
      %v1959 = vunpack.c.l.s4 1966171168
      %v1960 = vunpack.c.0.s8 %v1959
      %v1961 = vlaneseq
      %v1962 = vshrl.u32 %v1961, 7
      %v1963 = vsub.s32 %v1960, %v1962
      %v1964 = vrot.slane %v1948, %v1963
      %v1966 = vunpack.c.l.s4 1966171168
      %v1967 = vunpack.c.0.s8 %v1966
      %v1968 = vlaneseq
      %v1969 = vshrl.u32 %v1968, 7
      %v1970 = vsub.s32 %v1967, %v1969
      %v1971 = vrot.slane %v1955, %v1970
      %v1973 = vunpack.c.l.s4 1966171168
      %v1974 = vunpack.c.0.s8 %v1973
      %v1975 = vlaneseq
      %v1976 = vshrl.u32 %v1975, 7
      %v1977 = vsub.s32 %v1974, %v1976
      %v1978 = vrot.slane %v1956, %v1977
      %v1980 = vunpack.c.l.s4 1966171168
      %v1981 = vunpack.c.0.s8 %v1980
      %v1982 = vlaneseq
      %v1983 = vshrl.u32 %v1982, 7
      %v1984 = vsub.s32 %v1981, %v1983
      %v1985 = vrot.slane %v1957, %v1984
      %v1986 = vcombine.high %v1964, %v1964
      %v1987 = vcombine.high %v1971, %v1971
      %v1988 = vcombine.high %v1978, %v1978
      %v1989 = vcombine.high %v1985, %v1985
      %v2006 = vsub.f32 %v1874, %v1915
      %v2007 = vsub.f32 %v1875, %v1929
      %v2008 = vsub.f32 %v1876, %v1937
      %v2009 = vsub.f32 %v1877, %v1939
      %v2010 = vsub.f32 %v1878, %v1922
      %v2011 = vsub.f32 %v1879, %v1936
      %v2012 = vsub.f32 %v1880, %v1938
      %v2013 = vsub.f32 %v1881, %v1940
      %v2014 = vsub.f32 %v1882, %v1964
      %v2015 = vsub.f32 %v1883, %v1978
      %v2016 = vsub.f32 %v1884, %v1986
      %v2017 = vsub.f32 %v1885, %v1988
      %v2018 = vsub.f32 %v1886, %v1971
      %v2019 = vsub.f32 %v1887, %v1985
      %v2020 = vsub.f32 %v1888, %v1987
      %v2021 = vsub.f32 %v1889, %v1989
      %2022 = vst [vmem:[%s453] sm:$0x1] %v2006
      %2023 = vst [vmem:[%s453 + $0x10] sm:$0x1] %v2007
      %2024 = vst [vmem:[%s453 + $0x20] sm:$0x1] %v2008
      %2025 = vst [vmem:[%s453 + $0x30] sm:$0x1] %v2009
      %2026 = vst [vmem:[%s453 + $0x40] sm:$0x1] %v2010
      %2027 = vst [vmem:[%s453 + $0x50] sm:$0x1] %v2011
      %2028 = vst [vmem:[%s453 + $0x60] sm:$0x1] %v2012
      %2029 = vst [vmem:[%s453 + $0x70] sm:$0x1] %v2013
      %2030 = vst [vmem:[%s453 + $0x80] sm:$0x1] %v2014
      %2031 = vst [vmem:[%s453 + $0x90] sm:$0x1] %v2015
      %2032 = vst [vmem:[%s453 + $0xa0] sm:$0x1] %v2016
      %2033 = vst [vmem:[%s453 + $0xb0] sm:$0x1] %v2017
      %2034 = vst [vmem:[%s453 + $0xc0] sm:$0x1] %v2018
      %2035 = vst [vmem:[%s453 + $0xd0] sm:$0x1] %v2019
      %2036 = vst [vmem:[%s453 + $0xe0] sm:$0x1] %v2020
      %2037 = vst [vmem:[%s453 + $0xf0] sm:$0x1] %v2021
      %v2038 = vld [vmem:[%s453 + $0xf] sm:$0x1]
      %v2039 = vld [vmem:[%s453 + $0x1f] sm:$0x1]
      %v2040 = vld [vmem:[%s453 + $0x2f] sm:$0x1]
      %v2041 = vld [vmem:[%s453 + $0x3f] sm:$0x1]
      %v2042 = vld [vmem:[%s453 + $0x4f] sm:$0x1]
      %v2043 = vld [vmem:[%s453 + $0x5f] sm:$0x1]
      %v2044 = vld [vmem:[%s453 + $0x6f] sm:$0x1]
      %v2045 = vld [vmem:[%s453 + $0x7f] sm:$0x1]
      %v2046 = vld [vmem:[%s453 + $0x8f] sm:$0x1]
      %v2047 = vld [vmem:[%s453 + $0x9f] sm:$0x1]
      %v2048 = vld [vmem:[%s453 + $0xaf] sm:$0x1]
      %v2049 = vld [vmem:[%s453 + $0xbf] sm:$0x1]
      %v2050 = vld [vmem:[%s453 + $0xcf] sm:$0x1]
      %v2051 = vld [vmem:[%s453 + $0xdf] sm:$0x1]
      %v2052 = vld [vmem:[%s453 + $0xef] sm:$0x1]
      %v2053 = vld [vmem:[%s453 + $0xff] sm:$0x1]
      %v2056 = vcombine.high %v1707, %v1707
      %v2058 = vunpack.c.l.s4 1966171168
      %v2059 = vunpack.c.0.s8 %v2058
      %v2060 = vlaneseq
      %v2061 = vshrl.u32 %v2060, 7
      %v2062 = vsub.s32 %v2059, %v2061
      %v2063 = vrot.slane %v1707, %v2062
      %v2065 = vunpack.c.l.s4 1966171168
      %v2066 = vunpack.c.0.s8 %v2065
      %v2067 = vlaneseq
      %v2068 = vshrl.u32 %v2067, 7
      %v2069 = vsub.s32 %v2066, %v2068
      %v2070 = vrot.slane %v2056, %v2069
      %v2071 = vcombine.high %v2063, %v2063
      %v2072 = vcombine.high %v2070, %v2070
      %v2074 = vunpack.c.l.s4 1966171168
      %v2075 = vunpack.c.0.s8 %v2074
      %v2076 = vlaneseq
      %v2077 = vshrl.u32 %v2076, 7
      %v2078 = vsub.s32 %v2075, %v2077
      %v2079 = vrot.slane %v2063, %v2078
      %v2081 = vunpack.c.l.s4 1966171168
      %v2082 = vunpack.c.0.s8 %v2081
      %v2083 = vlaneseq
      %v2084 = vshrl.u32 %v2083, 7
      %v2085 = vsub.s32 %v2082, %v2084
      %v2086 = vrot.slane %v2070, %v2085
      %v2088 = vunpack.c.l.s4 1966171168
      %v2089 = vunpack.c.0.s8 %v2088
      %v2090 = vlaneseq
      %v2091 = vshrl.u32 %v2090, 7
      %v2092 = vsub.s32 %v2089, %v2091
      %v2093 = vrot.slane %v2071, %v2092
      %v2095 = vunpack.c.l.s4 1966171168
      %v2096 = vunpack.c.0.s8 %v2095
      %v2097 = vlaneseq
      %v2098 = vshrl.u32 %v2097, 7
      %v2099 = vsub.s32 %v2096, %v2098
      %v2100 = vrot.slane %v2072, %v2099
      %v2101 = vcombine.high %v2079, %v2079
      %v2102 = vcombine.high %v2086, %v2086
      %v2103 = vcombine.high %v2093, %v2093
      %v2104 = vcombine.high %v2100, %v2100
      %v2105 = vcombine.high %v1710, %v1710
      %v2107 = vunpack.c.l.s4 1966171168
      %v2108 = vunpack.c.0.s8 %v2107
      %v2109 = vlaneseq
      %v2110 = vshrl.u32 %v2109, 7
      %v2111 = vsub.s32 %v2108, %v2110
      %v2112 = vrot.slane %v1710, %v2111
      %v2114 = vunpack.c.l.s4 1966171168
      %v2115 = vunpack.c.0.s8 %v2114
      %v2116 = vlaneseq
      %v2117 = vshrl.u32 %v2116, 7
      %v2118 = vsub.s32 %v2115, %v2117
      %v2119 = vrot.slane %v2105, %v2118
      %v2120 = vcombine.high %v2112, %v2112
      %v2121 = vcombine.high %v2119, %v2119
      %v2123 = vunpack.c.l.s4 1966171168
      %v2124 = vunpack.c.0.s8 %v2123
      %v2125 = vlaneseq
      %v2126 = vshrl.u32 %v2125, 7
      %v2127 = vsub.s32 %v2124, %v2126
      %v2128 = vrot.slane %v2112, %v2127
      %v2130 = vunpack.c.l.s4 1966171168
      %v2131 = vunpack.c.0.s8 %v2130
      %v2132 = vlaneseq
      %v2133 = vshrl.u32 %v2132, 7
      %v2134 = vsub.s32 %v2131, %v2133
      %v2135 = vrot.slane %v2119, %v2134
      %v2137 = vunpack.c.l.s4 1966171168
      %v2138 = vunpack.c.0.s8 %v2137
      %v2139 = vlaneseq
      %v2140 = vshrl.u32 %v2139, 7
      %v2141 = vsub.s32 %v2138, %v2140
      %v2142 = vrot.slane %v2120, %v2141
      %v2144 = vunpack.c.l.s4 1966171168
      %v2145 = vunpack.c.0.s8 %v2144
      %v2146 = vlaneseq
      %v2147 = vshrl.u32 %v2146, 7
      %v2148 = vsub.s32 %v2145, %v2147
      %v2149 = vrot.slane %v2121, %v2148
      %v2150 = vcombine.high %v2128, %v2128
      %v2151 = vcombine.high %v2135, %v2135
      %v2152 = vcombine.high %v2142, %v2142
      %v2153 = vcombine.high %v2149, %v2149
      %v2170 = vsub.f32 %v2038, %v2079
      %v2171 = vsub.f32 %v2039, %v2093
      %v2172 = vsub.f32 %v2040, %v2101
      %v2173 = vsub.f32 %v2041, %v2103
      %v2174 = vsub.f32 %v2042, %v2086
      %v2175 = vsub.f32 %v2043, %v2100
      %v2176 = vsub.f32 %v2044, %v2102
      %v2177 = vsub.f32 %v2045, %v2104
      %v2178 = vsub.f32 %v2046, %v2128
      %v2179 = vsub.f32 %v2047, %v2142
      %v2180 = vsub.f32 %v2048, %v2150
      %v2181 = vsub.f32 %v2049, %v2152
      %v2182 = vsub.f32 %v2050, %v2135
      %v2183 = vsub.f32 %v2051, %v2149
      %v2184 = vsub.f32 %v2052, %v2151
      %v2185 = vsub.f32 %v2053, %v2153
      %2186 = vst [vmem:[%s453 + $0xf] sm:$0x1] %v2170
      %2187 = vst [vmem:[%s453 + $0x1f] sm:$0x1] %v2171
      %2188 = vst [vmem:[%s453 + $0x2f] sm:$0x1] %v2172
      %2189 = vst [vmem:[%s453 + $0x3f] sm:$0x1] %v2173
      %2190 = vst [vmem:[%s453 + $0x4f] sm:$0x1] %v2174
      %2191 = vst [vmem:[%s453 + $0x5f] sm:$0x1] %v2175
      %2192 = vst [vmem:[%s453 + $0x6f] sm:$0x1] %v2176
      %2193 = vst [vmem:[%s453 + $0x7f] sm:$0x1] %v2177
      %2194 = vst [vmem:[%s453 + $0x8f] sm:$0x1] %v2178
      %2195 = vst [vmem:[%s453 + $0x9f] sm:$0x1] %v2179
      %2196 = vst [vmem:[%s453 + $0xaf] sm:$0x1] %v2180
      %2197 = vst [vmem:[%s453 + $0xbf] sm:$0x1] %v2181
      %2198 = vst [vmem:[%s453 + $0xcf] sm:$0x1] %v2182
      %2199 = vst [vmem:[%s453 + $0xdf] sm:$0x1] %v2183
      %2200 = vst [vmem:[%s453 + $0xef] sm:$0x1] %v2184
      %2201 = vst [vmem:[%s453 + $0xff] sm:$0x1] %v2185
      %p2202 = scmp.lt.s32.totalorder %s21, 1
      %s2203 = scalar_select %p2202, %s21, 1
      %s2204 = smul.addr %s2203, 32
      %s2205 = smul.addr %s2204, 8
      %s2206 = scalar_lea.vmem %s10, %s2205
      // Predicated region
      $region61: #{ray_upsampler_forward.1} parent=59 // pred_check
        %p2207 = pneg %p279
      $region62: #{ray_upsampler_forward.1} parent=59 // pred_check_branch
        %2209 = sbr.rel (%p2207) target = $region64
      $region63: #{ray_upsampler_forward.1} parent=59 // pred_region
        _
      $region64: #{ray_upsampler_forward.1} parent=59 // pred_fallthru
        _
    $region60: #{ray_upsampler_forward.1} parent=5 // pred_fallthru
      _
    %p2210 = scmp.le.s32.totalorder 2, %s16
    // Predicated region
    $region65: #{ray_upsampler_forward.1} parent=5 // pred_check
      %p2211 = pneg %p2210
    $region66: #{ray_upsampler_forward.1} parent=5 // pred_check_branch
      %2213 = sbr.rel (%p2211) target = $region68
    $region67: #{ray_upsampler_forward.1} parent=5 // pred_region
      %s2214 = ssub.s32 %s16, 2
      // Predicated region
      $region69: #{ray_upsampler_forward.1} parent=67 // pred_check
        %p2215 = pneg %p285
      $region70: #{ray_upsampler_forward.1} parent=67 // pred_check_branch
        %2217 = sbr.rel (%p2215) target = $region72
      $region71: #{ray_upsampler_forward.1} parent=67 // pred_region
        %p2218 = scmp.lt.s32.totalorder %s22, 1
        %s2219 = scalar_select %p2218, %s22, 1
        %s2220 = smul.addr %s2219, 32
        %s2221 = smul.addr %s2220, 8
        %s2222 = scalar_lea.vmem %s10, %s2221
      $region72: #{ray_upsampler_forward.1} parent=67 // pred_fallthru
        _
    $region68: #{ray_upsampler_forward.1} parent=5 // pred_fallthru
      _
  $region6: #{ray_upsampler_forward.1} parent=0 // loop_footer
    %s20 = sadd.s32 1, %s16
  $region7: #{ray_upsampler_forward.1} parent=0 // loop_footer_branch
    %15 = sbr.rel target = $region3
  $region8: #{ray_upsampler_forward.1} parent=0 // loop_exit
    _

</llo_original>
